<compile_context>
chip_gen: v7x
topology: tpu7x:2x2x1
jax: 0.10.0
libtpu: 0.0.40
codegen_flags: <defaults>
</compile_context>

<pallas_src>
import math

import jax
import jax.numpy as jnp
import numpy as np
from jax.experimental import pallas as pl
from jax.experimental.pallas import tpu as pltpu

# ---- problem sizes (small, consistent with the module: input_size=D, nhead=8) ----
BATCH = 2
SEQ = 8
D_MODEL = 32          # input_size
NHEAD = 8
HEAD_DIM = D_MODEL // NHEAD
DIM_FF = 64           # dim_feedforward
LAYER_NUM = 2
OUT_DIM = 16
EPS = 1e-5            # nn.LayerNorm default eps

BS = BATCH * SEQ              # 16
BHS = BATCH * NHEAD * SEQ     # 128

# ---- bf16 weight slab layout: (rows, 128), all row offsets multiples of 16 ----
LAYER_W_ROWS = 5 * D_MODEL + DIM_FF          # wq(32)+wk(32)+wv(32)+wo(32)+w1(64)+w2(32) = 224
W_OUT_OFF = LAYER_NUM * LAYER_W_ROWS         # 448
W_ROWS = W_OUT_OFF + OUT_DIM                 # 464

# ---- f32 vector/mask slab layout: (rows, 128), block offsets multiples of 8 ----
VEC_ROWS_PER_LAYER = 10                      # bq,bk,bv,bo,b1,b2,g1,be1,g2,be2
BOUT_ROW = LAYER_NUM * VEC_ROWS_PER_LAYER    # 20
MASK2_OFF = 24                               # head column mask   (BHS, D)
CROSS_OFF = MASK2_OFF + BHS                  # 152: cross-batch mask (BS, BHS)
BSUM_OFF = CROSS_OFF + BS                    # 168: block-sum matrix (BHS, BHS)
V_ROWS = BSUM_OFF + BHS                      # 296


def _mm_t(a, b):
    """a @ b.T, bf16 operands, f32 accumulation. a (m,k), b (n,k) -> (m,n)."""
    return jax.lax.dot_general(
        a.astype(jnp.bfloat16), b.astype(jnp.bfloat16),
        (((1,), (1,)), ((), ())), preferred_element_type=jnp.float32)


def _mm(a, b):
    """a @ b, bf16 operands, f32 accumulation. a (m,k), b (k,n) -> (m,n)."""
    return jax.lax.dot_general(
        a.astype(jnp.bfloat16), b.astype(jnp.bfloat16),
        (((1,), (0,)), ((), ())), preferred_element_type=jnp.float32)


def _layer_norm(y, g, b):
    m = jnp.mean(y, axis=-1, keepdims=True)
    var = jnp.mean((y - m) ** 2, axis=-1, keepdims=True)
    return (y - m) * jax.lax.rsqrt(var + EPS) * g + b


def trans_kernel(x_ref, w_ref, v_ref, out_ref):
    B, S, D, F, H = BATCH, SEQ, D_MODEL, DIM_FF, NHEAD

    # Whole problem resident in VMEM; leading-dim collapse is layout-free.
    x = x_ref[...].reshape(BS, D)                                   # (16, 32) f32

    # Constant masks (kept f32: they only feed VPU elementwise / f32 MXU).
    # Key/value expansion row index kr = h*(B*S) + b*S + s.
    mask2 = v_ref[MASK2_OFF:MASK2_OFF + BHS, :D]                    # (128, 32)
    cross = v_ref[CROSS_OFF:CROSS_OFF + BS, :BHS]                   # (16, 128)
    bsum = v_ref[BSUM_OFF:BSUM_OFF + BHS, :BHS]                     # (128, 128)

    for l in range(LAYER_NUM):                                      # static, 2 iters
        wb = l * LAYER_W_ROWS
        wq = w_ref[wb:wb + D, :D]                                   # bf16, 1/sqrt(hd) folded in
        wk = w_ref[wb + D:wb + 2 * D, :D]
        wv = w_ref[wb + 2 * D:wb + 3 * D, :D]
        wo = w_ref[wb + 3 * D:wb + 4 * D, :D]
        w1 = w_ref[wb + 4 * D:wb + 4 * D + F, :D]
        w2 = w_ref[wb + 4 * D + F:wb + 5 * D + F, :F]

        vb = l * VEC_ROWS_PER_LAYER
        bq = v_ref[vb + 0:vb + 1, :D]
        bk = v_ref[vb + 1:vb + 2, :D]
        bv = v_ref[vb + 2:vb + 3, :D]
        bo = v_ref[vb + 3:vb + 4, :D]
        b1 = v_ref[vb + 4:vb + 5, :F]
        b2 = v_ref[vb + 5:vb + 6, :D]
        g1 = v_ref[vb + 6:vb + 7, :D]
        be1 = v_ref[vb + 7:vb + 8, :D]
        g2 = v_ref[vb + 8:vb + 9, :D]
        be2 = v_ref[vb + 9:vb + 10, :D]

        # --- Q/K/V projections: three small matmuls, no lane-offset extracts ---
        xb = x.astype(jnp.bfloat16)                                 # hoisted cast (used 3x)
        q = _mm_t(xb, wq) + bq                                      # (16, 32), pre-scaled
        k = _mm_t(xb, wk) + bk
        v = _mm_t(xb, wv) + bv

        # --- block-diagonal multi-head attention, all batches at once ---
        kbd = (jnp.tile(k, (H, 1)) * mask2).astype(jnp.bfloat16)    # (128, 32)
        vbd = (jnp.tile(v, (H, 1)) * mask2).astype(jnp.bfloat16)    # (128, 32)
        s_all = _mm_t(q.astype(jnp.bfloat16), kbd)                  # (16, 128) f32
        # Shift by the GLOBAL per-row max (over all heads and batches); the shift cancels
        # inside every per-(batch,head) softmax block, so the result is exact.
        p = jnp.exp(s_all - jnp.max(s_all, axis=-1, keepdims=True))
        # Exact f32 per-(batch,head) block sums on the MXU.  Using the UNmasked p keeps the
        # denominator strictly positive at cross-batch columns, so the masked numerators
        # below never hit 0 * inf.
        denom = jax.lax.dot_general(p, bsum, (((1,), (0,)), ((), ())),
                                    preferred_element_type=jnp.float32)
        p = p * (cross * pl.reciprocal(denom, approx=True))         # zero cross-batch blocks
        heads = _mm(p.astype(jnp.bfloat16), vbd)                    # (16, 32) head-concat

        attn = _mm_t(heads.astype(jnp.bfloat16), wo) + bo           # (16, 32)
        x = _layer_norm(x + attn, g1, be1)

        # --- feed-forward ---
        h1 = jnp.maximum(_mm_t(x.astype(jnp.bfloat16), w1) + b1, 0.0)   # (16, 64)
        x = _layer_norm(x + _mm_t(h1.astype(jnp.bfloat16), w2) + b2, g2, be2)

    # --- output head ---
    wout = w_ref[W_OUT_OFF:W_OUT_OFF + OUT_DIM, :D]
    bout = v_ref[BOUT_ROW:BOUT_ROW + 1, :OUT_DIM]
    out = _mm_t(x.astype(jnp.bfloat16), wout) + bout                # (16, 16)
    out_ref[...] = out.reshape(B, S, OUT_DIM)


def pack_params(params):
    """Pack all parameters (+ constant masks) into 2 lane-dense (rows, 128) slabs.

    Runs ONCE at init, entirely in host numpy -> no device ops on the launch path.
    """
    L, D, F, H, S, B, hd = LAYER_NUM, D_MODEL, DIM_FF, NHEAD, SEQ, BATCH, HEAD_DIM
    scale = 1.0 / math.sqrt(hd)

    W = np.zeros((W_ROWS, 128), np.float32)
    for l in range(L):
        base = l * LAYER_W_ROWS
        W[base:base + D, :D] = np.asarray(params["wq"][l]) * scale
        W[base + D:base + 2 * D, :D] = np.asarray(params["wk"][l])
        W[base + 2 * D:base + 3 * D, :D] = np.asarray(params["wv"][l])
        W[base + 3 * D:base + 4 * D, :D] = np.asarray(params["wo"][l])
        W[base + 4 * D:base + 4 * D + F, :D] = np.asarray(params["w1"][l])
        W[base + 4 * D + F:base + 5 * D + F, :F] = np.asarray(params["w2"][l])
    W[W_OUT_OFF:W_OUT_OFF + OUT_DIM, :D] = np.asarray(params["wout"])
    slab_w = jnp.asarray(W, jnp.bfloat16)

    V = np.zeros((V_ROWS, 128), np.float32)
    for l in range(L):
        vb = l * VEC_ROWS_PER_LAYER
        V[vb + 0, :D] = np.asarray(params["bq"][l]) * scale
        V[vb + 1, :D] = np.asarray(params["bk"][l])
        V[vb + 2, :D] = np.asarray(params["bv"][l])
        V[vb + 3, :D] = np.asarray(params["bo"][l])
        V[vb + 4, :F] = np.asarray(params["b1"][l])
        V[vb + 5, :D] = np.asarray(params["b2"][l])
        V[vb + 6, :D] = np.asarray(params["g1"][l])
        V[vb + 7, :D] = np.asarray(params["be1"][l])
        V[vb + 8, :D] = np.asarray(params["g2"][l])
        V[vb + 9, :D] = np.asarray(params["be2"][l])
    V[BOUT_ROW, :OUT_DIM] = np.asarray(params["bout"])

    # Masks for the batch-merged block-diagonal attention.  kr = h*(B*S) + b*S + s.
    kr = np.arange(B * H * S)
    d = np.arange(D)
    qr = np.arange(B * S)
    V[MASK2_OFF:MASK2_OFF + B * H * S, :D] = (kr[:, None] // (B * S) == d[None, :] // hd)
    V[CROSS_OFF:CROSS_OFF + B * S, :B * H * S] = (qr[:, None] // S == (kr[None, :] // S) % B)
    V[BSUM_OFF:BSUM_OFF + B * H * S, :B * H * S] = (kr[:, None] // S == kr[None, :] // S)
    slab_v = jnp.asarray(V, jnp.float32)
    return slab_w, slab_v


def trans_forward(x, slab_w, slab_v):
    B, S, D = x.shape
    assert D == D_MODEL
    return pl.pallas_call(
        trans_kernel,
        out_shape=jax.ShapeDtypeStruct((B, S, OUT_DIM), jnp.float32),
        grid=(1,),                                     # single step: whole problem on one TC
        in_specs=[
            pl.BlockSpec((B, S, D), lambda i: (0, 0, 0)),
            pl.BlockSpec(slab_w.shape, lambda i: (0, 0)),
            pl.BlockSpec(slab_v.shape, lambda i: (0, 0)),
        ],
        out_specs=pl.BlockSpec((B, S, OUT_DIM), lambda i: (0, 0, 0)),
        compiler_params=pltpu.CompilerParams(dimension_semantics=("arbitrary",)),
        cost_estimate=pl.CostEstimate(flops=2_600_000, transcendentals=10_000,
                                      bytes_accessed=280_000),
    )(x, slab_w, slab_v)


# ---------------- deterministic parameter init (synthetic) ----------------
def init_params(key):
    p = {}
    ks = jax.random.split(key, 32)
    i = 0

    def nxt():
        nonlocal i
        k = ks[i]
        i += 1
        return k

    def w(shape, scale=0.05):
        return jax.random.normal(nxt(), shape, jnp.float32) * scale

    L, D, F = LAYER_NUM, D_MODEL, DIM_FF
    p["wq"], p["wk"], p["wv"], p["wo"] = (w((L, D, D)) for _ in range(4))
    p["bq"], p["bk"], p["bv"], p["bo"] = (w((L, D), 0.02) for _ in range(4))
    p["w1"], p["b1"] = w((L, F, D)), w((L, F), 0.02)
    p["w2"], p["b2"] = w((L, D, F)), w((L, D), 0.02)
    p["g1"], p["be1"] = jnp.ones((L, D), jnp.float32), jnp.zeros((L, D), jnp.float32)
    p["g2"], p["be2"] = jnp.ones((L, D), jnp.float32), jnp.zeros((L, D), jnp.float32)
    p["wout"], p["bout"] = w((OUT_DIM, D)), w((OUT_DIM,), 0.02)
    return p


# ---------------- pure-JAX reference (f32, for sanity check) ----------------
def reference(x, p):
    B, S, D = x.shape
    for l in range(LAYER_NUM):
        q = x @ p["wq"][l].T + p["bq"][l]
        k = x @ p["wk"][l].T + p["bk"][l]
        v = x @ p["wv"][l].T + p["bv"][l]
        qh = q.reshape(B, S, NHEAD, HEAD_DIM).transpose(0, 2, 1, 3)
        kh = k.reshape(B, S, NHEAD, HEAD_DIM).transpose(0, 2, 1, 3)
        vh = v.reshape(B, S, NHEAD, HEAD_DIM).transpose(0, 2, 1, 3)
        s = jnp.einsum("bhqd,bhkd->bhqk", qh, kh) / math.sqrt(HEAD_DIM)
        a = jax.nn.softmax(s, axis=-1)
        o = jnp.einsum("bhqk,bhkd->bhqd", a, vh).transpose(0, 2, 1, 3).reshape(B, S, D)
        attn = o @ p["wo"][l].T + p["bo"][l]

        def ln(y, g, b):
            m = jnp.mean(y, -1, keepdims=True)
            var = jnp.mean((y - m) ** 2, -1, keepdims=True)
            return (y - m) * jax.lax.rsqrt(var + EPS) * g + b

        x = ln(x + attn, p["g1"][l], p["be1"][l])
        h1 = jax.nn.relu(x @ p["w1"][l].T + p["b1"][l])
        h2 = h1 @ p["w2"][l].T + p["b2"][l]
        x = ln(x + h2, p["g2"][l], p["be2"][l])
    return x @ p["wout"].T + p["bout"]


if __name__ == "__main__":
    key = jax.random.PRNGKey(0)
    kx, kp = jax.random.split(key)
    x = jax.random.normal(kx, (BATCH, SEQ, D_MODEL), jnp.float32)
    params = init_params(kp)

    # Parameter packing happens ONCE here (host-side numpy), not on the launch path.
    slab_w, slab_v = pack_params(params)

    out = trans_forward(x, slab_w, slab_v)
    out = jax.block_until_ready(out)

    ref = reference(x, params)
    assert out.shape == (BATCH, SEQ, OUT_DIM)
    assert bool(jnp.all(jnp.isfinite(out)))
    np.testing.assert_allclose(np.asarray(out), np.asarray(ref), rtol=2e-2, atol=2e-2)

    print("KERNEL_OK")
</pallas_src>

<mosaic_0001>
module attributes {stable_mosaic.version = 11 : i64} {
  func.func @trans_kernel(%arg0: i32, %arg1: memref<2x8x32xf32, #tpu.memory_space<vmem>>, %arg2: memref<464x128xbf16, #tpu.memory_space<vmem>>, %arg3: memref<296x128xf32, #tpu.memory_space<vmem>>, %arg4: memref<2x8x16xf32, #tpu.memory_space<vmem>>) attributes {dimension_semantics = [#tpu.dimension_semantics<arbitrary>], iteration_bounds = array<i64: 1>, scalar_prefetch = 0 : i64, scratch_operands = 0 : i64, tpu.core_type = #tpu.core_type<tc>, window_params = [{pipeline_mode = #tpu.pipeline_mode<synchronous>, transform_indices = @transform_0, window_bounds = array<i64: 2, 8, 32>}, {pipeline_mode = #tpu.pipeline_mode<synchronous>, transform_indices = @transform_1, window_bounds = array<i64: 464, 128>}, {pipeline_mode = #tpu.pipeline_mode<synchronous>, transform_indices = @transform_2, window_bounds = array<i64: 296, 128>}, {pipeline_mode = #tpu.pipeline_mode<synchronous>, transform_indices = @transform_3, window_bounds = array<i64: 2, 8, 16>}]} {
    %c0 = arith.constant 0 : index
    %c0_0 = arith.constant 0 : index
    %c0_1 = arith.constant 0 : index
    %0 = vector.load %arg1[%c0, %c0_0, %c0_1] : memref<2x8x32xf32, #tpu.memory_space<vmem>>, vector<2x8x32xf32>
    %1 = vector.shape_cast %0 : vector<2x8x32xf32> to vector<16x32xf32>
    %c24 = arith.constant 24 : index
    %c0_2 = arith.constant 0 : index
    %2 = vector.load %arg3[%c24, %c0_2] : memref<296x128xf32, #tpu.memory_space<vmem>>, vector<128x32xf32>
    %c152 = arith.constant 152 : index
    %c0_3 = arith.constant 0 : index
    %3 = vector.load %arg3[%c152, %c0_3] : memref<296x128xf32, #tpu.memory_space<vmem>>, vector<16x128xf32>
    %c168 = arith.constant 168 : index
    %c0_4 = arith.constant 0 : index
    %4 = vector.load %arg3[%c168, %c0_4] : memref<296x128xf32, #tpu.memory_space<vmem>>, vector<128x128xf32>
    %c0_5 = arith.constant 0 : index
    %c0_6 = arith.constant 0 : index
    %5 = vector.load %arg2[%c0_5, %c0_6] : memref<464x128xbf16, #tpu.memory_space<vmem>>, vector<32x32xbf16>
    %c32 = arith.constant 32 : index
    %c0_7 = arith.constant 0 : index
    %6 = vector.load %arg2[%c32, %c0_7] : memref<464x128xbf16, #tpu.memory_space<vmem>>, vector<32x32xbf16>
    %c64 = arith.constant 64 : index
    %c0_8 = arith.constant 0 : index
    %7 = vector.load %arg2[%c64, %c0_8] : memref<464x128xbf16, #tpu.memory_space<vmem>>, vector<32x32xbf16>
    %c96 = arith.constant 96 : index
    %c0_9 = arith.constant 0 : index
    %8 = vector.load %arg2[%c96, %c0_9] : memref<464x128xbf16, #tpu.memory_space<vmem>>, vector<32x32xbf16>
    %c128 = arith.constant 128 : index
    %c0_10 = arith.constant 0 : index
    %9 = vector.load %arg2[%c128, %c0_10] : memref<464x128xbf16, #tpu.memory_space<vmem>>, vector<64x32xbf16>
    %c192 = arith.constant 192 : index
    %c0_11 = arith.constant 0 : index
    %10 = vector.load %arg2[%c192, %c0_11] : memref<464x128xbf16, #tpu.memory_space<vmem>>, vector<32x64xbf16>
    %c0_12 = arith.constant 0 : index
    %c0_13 = arith.constant 0 : index
    %11 = vector.load %arg3[%c0_12, %c0_13] : memref<296x128xf32, #tpu.memory_space<vmem>>, vector<1x32xf32>
    %c1 = arith.constant 1 : index
    %c0_14 = arith.constant 0 : index
    %12 = vector.load %arg3[%c1, %c0_14] : memref<296x128xf32, #tpu.memory_space<vmem>>, vector<1x32xf32>
    %c2 = arith.constant 2 : index
    %c0_15 = arith.constant 0 : index
    %13 = vector.load %arg3[%c2, %c0_15] : memref<296x128xf32, #tpu.memory_space<vmem>>, vector<1x32xf32>
    %c3 = arith.constant 3 : index
    %c0_16 = arith.constant 0 : index
    %14 = vector.load %arg3[%c3, %c0_16] : memref<296x128xf32, #tpu.memory_space<vmem>>, vector<1x32xf32>
    %c4 = arith.constant 4 : index
    %c0_17 = arith.constant 0 : index
    %15 = vector.load %arg3[%c4, %c0_17] : memref<296x128xf32, #tpu.memory_space<vmem>>, vector<1x64xf32>
    %c5 = arith.constant 5 : index
    %c0_18 = arith.constant 0 : index
    %16 = vector.load %arg3[%c5, %c0_18] : memref<296x128xf32, #tpu.memory_space<vmem>>, vector<1x32xf32>
    %c6 = arith.constant 6 : index
    %c0_19 = arith.constant 0 : index
    %17 = vector.load %arg3[%c6, %c0_19] : memref<296x128xf32, #tpu.memory_space<vmem>>, vector<1x32xf32>
    %c7 = arith.constant 7 : index
    %c0_20 = arith.constant 0 : index
    %18 = vector.load %arg3[%c7, %c0_20] : memref<296x128xf32, #tpu.memory_space<vmem>>, vector<1x32xf32>
    %c8 = arith.constant 8 : index
    %c0_21 = arith.constant 0 : index
    %19 = vector.load %arg3[%c8, %c0_21] : memref<296x128xf32, #tpu.memory_space<vmem>>, vector<1x32xf32>
    %c9 = arith.constant 9 : index
    %c0_22 = arith.constant 0 : index
    %20 = vector.load %arg3[%c9, %c0_22] : memref<296x128xf32, #tpu.memory_space<vmem>>, vector<1x32xf32>
    %21 = arith.truncf %1 : vector<16x32xf32> to vector<16x32xbf16>
    %cst = arith.constant dense<0.000000e+00> : vector<16x32xf32>
    %22 = tpu.matmul %21, %5, %cst {dimension_numbers = #tpu.dot_dimension_numbers<[1], [1], [0], [0], [0, 0, 1, 0], [], []>} : vector<16x32xbf16>, vector<32x32xbf16>, vector<16x32xf32> -> vector<16x32xf32>
    %23 = vector.broadcast %11 : vector<1x32xf32> to vector<16x32xf32>
    %24 = arith.addf %22, %23 : vector<16x32xf32>
    %cst_23 = arith.constant dense<0.000000e+00> : vector<16x32xf32>
    %25 = tpu.matmul %21, %6, %cst_23 {dimension_numbers = #tpu.dot_dimension_numbers<[1], [1], [0], [0], [0, 0, 1, 0], [], []>} : vector<16x32xbf16>, vector<32x32xbf16>, vector<16x32xf32> -> vector<16x32xf32>
    %26 = vector.broadcast %12 : vector<1x32xf32> to vector<16x32xf32>
    %27 = arith.addf %25, %26 : vector<16x32xf32>
    %cst_24 = arith.constant dense<0.000000e+00> : vector<16x32xf32>
    %28 = tpu.matmul %21, %7, %cst_24 {dimension_numbers = #tpu.dot_dimension_numbers<[1], [1], [0], [0], [0, 0, 1, 0], [], []>} : vector<16x32xbf16>, vector<32x32xbf16>, vector<16x32xf32> -> vector<16x32xf32>
    %29 = vector.broadcast %13 : vector<1x32xf32> to vector<16x32xf32>
    %30 = arith.addf %28, %29 : vector<16x32xf32>
    %31 = tpu.concatenate %27, %27, %27, %27, %27, %27, %27, %27 in 0 : vector<16x32xf32>, vector<16x32xf32>, vector<16x32xf32>, vector<16x32xf32>, vector<16x32xf32>, vector<16x32xf32>, vector<16x32xf32>, vector<16x32xf32> -> vector<128x32xf32>
    %32 = arith.mulf %31, %2 : vector<128x32xf32>
    %33 = arith.truncf %32 : vector<128x32xf32> to vector<128x32xbf16>
    %34 = tpu.concatenate %30, %30, %30, %30, %30, %30, %30, %30 in 0 : vector<16x32xf32>, vector<16x32xf32>, vector<16x32xf32>, vector<16x32xf32>, vector<16x32xf32>, vector<16x32xf32>, vector<16x32xf32>, vector<16x32xf32> -> vector<128x32xf32>
    %35 = arith.mulf %34, %2 : vector<128x32xf32>
    %36 = arith.truncf %35 : vector<128x32xf32> to vector<128x32xbf16>
    %37 = arith.truncf %24 : vector<16x32xf32> to vector<16x32xbf16>
    %cst_25 = arith.constant dense<0.000000e+00> : vector<16x128xf32>
    %38 = tpu.matmul %37, %33, %cst_25 {dimension_numbers = #tpu.dot_dimension_numbers<[1], [1], [0], [0], [0, 0, 1, 0], [], []>} : vector<16x32xbf16>, vector<128x32xbf16>, vector<16x128xf32> -> vector<16x128xf32>
    %cst_26 = arith.constant dense<0xFF800000> : vector<16xf32>
    %39 = vector.multi_reduction <maximumf>, %38, %cst_26 [1] : vector<16x128xf32> to vector<16xf32>
    %40 = vector.shape_cast %39 : vector<16xf32> to vector<16x1xf32>
    %41 = vector.broadcast %40 : vector<16x1xf32> to vector<16x128xf32>
    %42 = arith.subf %38, %41 : vector<16x128xf32>
    %43 = math.exp %42 : vector<16x128xf32>
    %cst_27 = arith.constant dense<0.000000e+00> : vector<16x128xf32>
    %44 = tpu.matmul %43, %4, %cst_27 {dimension_numbers = #tpu.dot_dimension_numbers<[1], [0], [0], [1], [0, 0, 1, 1], [], []>} : vector<16x128xf32>, vector<128x128xf32>, vector<16x128xf32> -> vector<16x128xf32>
    %45 = tpu.reciprocal %44 {approx = true} : vector<16x128xf32> -> vector<16x128xf32>
    %46 = arith.mulf %3, %45 : vector<16x128xf32>
    %47 = arith.mulf %43, %46 : vector<16x128xf32>
    %48 = arith.truncf %47 : vector<16x128xf32> to vector<16x128xbf16>
    %cst_28 = arith.constant dense<0.000000e+00> : vector<16x32xf32>
    %49 = tpu.matmul %48, %36, %cst_28 {dimension_numbers = #tpu.dot_dimension_numbers<[1], [0], [0], [1], [0, 0, 1, 1], [], []>} : vector<16x128xbf16>, vector<128x32xbf16>, vector<16x32xf32> -> vector<16x32xf32>
    %50 = arith.truncf %49 : vector<16x32xf32> to vector<16x32xbf16>
    %cst_29 = arith.constant dense<0.000000e+00> : vector<16x32xf32>
    %51 = tpu.matmul %50, %8, %cst_29 {dimension_numbers = #tpu.dot_dimension_numbers<[1], [1], [0], [0], [0, 0, 1, 0], [], []>} : vector<16x32xbf16>, vector<32x32xbf16>, vector<16x32xf32> -> vector<16x32xf32>
    %52 = vector.broadcast %14 : vector<1x32xf32> to vector<16x32xf32>
    %53 = arith.addf %51, %52 : vector<16x32xf32>
    %54 = arith.addf %1, %53 : vector<16x32xf32>
    %cst_30 = arith.constant dense<0.000000e+00> : vector<16xf32>
    %55 = vector.multi_reduction <add>, %54, %cst_30 [1] : vector<16x32xf32> to vector<16xf32>
    %56 = vector.shape_cast %55 : vector<16xf32> to vector<16x1xf32>
    %cst_31 = arith.constant 3.200000e+01 : f32
    %57 = vector.broadcast %cst_31 : f32 to vector<16x1xf32>
    %58 = arith.divf %56, %57 : vector<16x1xf32>
    %59 = vector.broadcast %58 : vector<16x1xf32> to vector<16x32xf32>
    %60 = arith.subf %54, %59 : vector<16x32xf32>
    %61 = arith.mulf %60, %60 : vector<16x32xf32>
    %cst_32 = arith.constant dense<0.000000e+00> : vector<16xf32>
    %62 = vector.multi_reduction <add>, %61, %cst_32 [1] : vector<16x32xf32> to vector<16xf32>
    %63 = vector.shape_cast %62 : vector<16xf32> to vector<16x1xf32>
    %cst_33 = arith.constant 3.200000e+01 : f32
    %64 = vector.broadcast %cst_33 : f32 to vector<16x1xf32>
    %65 = arith.divf %63, %64 : vector<16x1xf32>
    %66 = vector.broadcast %58 : vector<16x1xf32> to vector<16x32xf32>
    %67 = arith.subf %54, %66 : vector<16x32xf32>
    %cst_34 = arith.constant 9.99999974E-6 : f32
    %68 = vector.broadcast %cst_34 : f32 to vector<16x1xf32>
    %69 = arith.addf %65, %68 : vector<16x1xf32>
    %70 = math.rsqrt %69 : vector<16x1xf32>
    %71 = vector.broadcast %70 : vector<16x1xf32> to vector<16x32xf32>
    %72 = arith.mulf %67, %71 : vector<16x32xf32>
    %73 = vector.broadcast %17 : vector<1x32xf32> to vector<16x32xf32>
    %74 = arith.mulf %72, %73 : vector<16x32xf32>
    %75 = vector.broadcast %18 : vector<1x32xf32> to vector<16x32xf32>
    %76 = arith.addf %74, %75 : vector<16x32xf32>
    %77 = arith.truncf %76 : vector<16x32xf32> to vector<16x32xbf16>
    %cst_35 = arith.constant dense<0.000000e+00> : vector<16x64xf32>
    %78 = tpu.matmul %77, %9, %cst_35 {dimension_numbers = #tpu.dot_dimension_numbers<[1], [1], [0], [0], [0, 0, 1, 0], [], []>} : vector<16x32xbf16>, vector<64x32xbf16>, vector<16x64xf32> -> vector<16x64xf32>
    %79 = vector.broadcast %15 : vector<1x64xf32> to vector<16x64xf32>
    %80 = arith.addf %78, %79 : vector<16x64xf32>
    %cst_36 = arith.constant 0.000000e+00 : f32
    %81 = vector.broadcast %cst_36 : f32 to vector<16x64xf32>
    %82 = arith.maximumf %80, %81 : vector<16x64xf32>
    %83 = arith.truncf %82 : vector<16x64xf32> to vector<16x64xbf16>
    %cst_37 = arith.constant dense<0.000000e+00> : vector<16x32xf32>
    %84 = tpu.matmul %83, %10, %cst_37 {dimension_numbers = #tpu.dot_dimension_numbers<[1], [1], [0], [0], [0, 0, 1, 0], [], []>} : vector<16x64xbf16>, vector<32x64xbf16>, vector<16x32xf32> -> vector<16x32xf32>
    %85 = arith.addf %76, %84 : vector<16x32xf32>
    %86 = vector.broadcast %16 : vector<1x32xf32> to vector<16x32xf32>
    %87 = arith.addf %85, %86 : vector<16x32xf32>
    %cst_38 = arith.constant dense<0.000000e+00> : vector<16xf32>
    %88 = vector.multi_reduction <add>, %87, %cst_38 [1] : vector<16x32xf32> to vector<16xf32>
    %89 = vector.shape_cast %88 : vector<16xf32> to vector<16x1xf32>
    %cst_39 = arith.constant 3.200000e+01 : f32
    %90 = vector.broadcast %cst_39 : f32 to vector<16x1xf32>
    %91 = arith.divf %89, %90 : vector<16x1xf32>
    %92 = vector.broadcast %91 : vector<16x1xf32> to vector<16x32xf32>
    %93 = arith.subf %87, %92 : vector<16x32xf32>
    %94 = arith.mulf %93, %93 : vector<16x32xf32>
    %cst_40 = arith.constant dense<0.000000e+00> : vector<16xf32>
    %95 = vector.multi_reduction <add>, %94, %cst_40 [1] : vector<16x32xf32> to vector<16xf32>
    %96 = vector.shape_cast %95 : vector<16xf32> to vector<16x1xf32>
    %cst_41 = arith.constant 3.200000e+01 : f32
    %97 = vector.broadcast %cst_41 : f32 to vector<16x1xf32>
    %98 = arith.divf %96, %97 : vector<16x1xf32>
    %99 = vector.broadcast %91 : vector<16x1xf32> to vector<16x32xf32>
    %100 = arith.subf %87, %99 : vector<16x32xf32>
    %cst_42 = arith.constant 9.99999974E-6 : f32
    %101 = vector.broadcast %cst_42 : f32 to vector<16x1xf32>
    %102 = arith.addf %98, %101 : vector<16x1xf32>
    %103 = math.rsqrt %102 : vector<16x1xf32>
    %104 = vector.broadcast %103 : vector<16x1xf32> to vector<16x32xf32>
    %105 = arith.mulf %100, %104 : vector<16x32xf32>
    %106 = vector.broadcast %19 : vector<1x32xf32> to vector<16x32xf32>
    %107 = arith.mulf %105, %106 : vector<16x32xf32>
    %108 = vector.broadcast %20 : vector<1x32xf32> to vector<16x32xf32>
    %109 = arith.addf %107, %108 : vector<16x32xf32>
    %c224 = arith.constant 224 : index
    %c0_43 = arith.constant 0 : index
    %110 = vector.load %arg2[%c224, %c0_43] : memref<464x128xbf16, #tpu.memory_space<vmem>>, vector<32x32xbf16>
    %c256 = arith.constant 256 : index
    %c0_44 = arith.constant 0 : index
    %111 = vector.load %arg2[%c256, %c0_44] : memref<464x128xbf16, #tpu.memory_space<vmem>>, vector<32x32xbf16>
    %c288 = arith.constant 288 : index
    %c0_45 = arith.constant 0 : index
    %112 = vector.load %arg2[%c288, %c0_45] : memref<464x128xbf16, #tpu.memory_space<vmem>>, vector<32x32xbf16>
    %c320 = arith.constant 320 : index
    %c0_46 = arith.constant 0 : index
    %113 = vector.load %arg2[%c320, %c0_46] : memref<464x128xbf16, #tpu.memory_space<vmem>>, vector<32x32xbf16>
    %c352 = arith.constant 352 : index
    %c0_47 = arith.constant 0 : index
    %114 = vector.load %arg2[%c352, %c0_47] : memref<464x128xbf16, #tpu.memory_space<vmem>>, vector<64x32xbf16>
    %c416 = arith.constant 416 : index
    %c0_48 = arith.constant 0 : index
    %115 = vector.load %arg2[%c416, %c0_48] : memref<464x128xbf16, #tpu.memory_space<vmem>>, vector<32x64xbf16>
    %c10 = arith.constant 10 : index
    %c0_49 = arith.constant 0 : index
    %116 = vector.load %arg3[%c10, %c0_49] : memref<296x128xf32, #tpu.memory_space<vmem>>, vector<1x32xf32>
    %c11 = arith.constant 11 : index
    %c0_50 = arith.constant 0 : index
    %117 = vector.load %arg3[%c11, %c0_50] : memref<296x128xf32, #tpu.memory_space<vmem>>, vector<1x32xf32>
    %c12 = arith.constant 12 : index
    %c0_51 = arith.constant 0 : index
    %118 = vector.load %arg3[%c12, %c0_51] : memref<296x128xf32, #tpu.memory_space<vmem>>, vector<1x32xf32>
    %c13 = arith.constant 13 : index
    %c0_52 = arith.constant 0 : index
    %119 = vector.load %arg3[%c13, %c0_52] : memref<296x128xf32, #tpu.memory_space<vmem>>, vector<1x32xf32>
    %c14 = arith.constant 14 : index
    %c0_53 = arith.constant 0 : index
    %120 = vector.load %arg3[%c14, %c0_53] : memref<296x128xf32, #tpu.memory_space<vmem>>, vector<1x64xf32>
    %c15 = arith.constant 15 : index
    %c0_54 = arith.constant 0 : index
    %121 = vector.load %arg3[%c15, %c0_54] : memref<296x128xf32, #tpu.memory_space<vmem>>, vector<1x32xf32>
    %c16 = arith.constant 16 : index
    %c0_55 = arith.constant 0 : index
    %122 = vector.load %arg3[%c16, %c0_55] : memref<296x128xf32, #tpu.memory_space<vmem>>, vector<1x32xf32>
    %c17 = arith.constant 17 : index
    %c0_56 = arith.constant 0 : index
    %123 = vector.load %arg3[%c17, %c0_56] : memref<296x128xf32, #tpu.memory_space<vmem>>, vector<1x32xf32>
    %c18 = arith.constant 18 : index
    %c0_57 = arith.constant 0 : index
    %124 = vector.load %arg3[%c18, %c0_57] : memref<296x128xf32, #tpu.memory_space<vmem>>, vector<1x32xf32>
    %c19 = arith.constant 19 : index
    %c0_58 = arith.constant 0 : index
    %125 = vector.load %arg3[%c19, %c0_58] : memref<296x128xf32, #tpu.memory_space<vmem>>, vector<1x32xf32>
    %126 = arith.truncf %109 : vector<16x32xf32> to vector<16x32xbf16>
    %cst_59 = arith.constant dense<0.000000e+00> : vector<16x32xf32>
    %127 = tpu.matmul %126, %110, %cst_59 {dimension_numbers = #tpu.dot_dimension_numbers<[1], [1], [0], [0], [0, 0, 1, 0], [], []>} : vector<16x32xbf16>, vector<32x32xbf16>, vector<16x32xf32> -> vector<16x32xf32>
    %128 = vector.broadcast %116 : vector<1x32xf32> to vector<16x32xf32>
    %129 = arith.addf %127, %128 : vector<16x32xf32>
    %cst_60 = arith.constant dense<0.000000e+00> : vector<16x32xf32>
    %130 = tpu.matmul %126, %111, %cst_60 {dimension_numbers = #tpu.dot_dimension_numbers<[1], [1], [0], [0], [0, 0, 1, 0], [], []>} : vector<16x32xbf16>, vector<32x32xbf16>, vector<16x32xf32> -> vector<16x32xf32>
    %131 = vector.broadcast %117 : vector<1x32xf32> to vector<16x32xf32>
    %132 = arith.addf %130, %131 : vector<16x32xf32>
    %cst_61 = arith.constant dense<0.000000e+00> : vector<16x32xf32>
    %133 = tpu.matmul %126, %112, %cst_61 {dimension_numbers = #tpu.dot_dimension_numbers<[1], [1], [0], [0], [0, 0, 1, 0], [], []>} : vector<16x32xbf16>, vector<32x32xbf16>, vector<16x32xf32> -> vector<16x32xf32>
    %134 = vector.broadcast %118 : vector<1x32xf32> to vector<16x32xf32>
    %135 = arith.addf %133, %134 : vector<16x32xf32>
    %136 = tpu.concatenate %132, %132, %132, %132, %132, %132, %132, %132 in 0 : vector<16x32xf32>, vector<16x32xf32>, vector<16x32xf32>, vector<16x32xf32>, vector<16x32xf32>, vector<16x32xf32>, vector<16x32xf32>, vector<16x32xf32> -> vector<128x32xf32>
    %137 = arith.mulf %136, %2 : vector<128x32xf32>
    %138 = arith.truncf %137 : vector<128x32xf32> to vector<128x32xbf16>
    %139 = tpu.concatenate %135, %135, %135, %135, %135, %135, %135, %135 in 0 : vector<16x32xf32>, vector<16x32xf32>, vector<16x32xf32>, vector<16x32xf32>, vector<16x32xf32>, vector<16x32xf32>, vector<16x32xf32>, vector<16x32xf32> -> vector<128x32xf32>
    %140 = arith.mulf %139, %2 : vector<128x32xf32>
    %141 = arith.truncf %140 : vector<128x32xf32> to vector<128x32xbf16>
    %142 = arith.truncf %129 : vector<16x32xf32> to vector<16x32xbf16>
    %cst_62 = arith.constant dense<0.000000e+00> : vector<16x128xf32>
    %143 = tpu.matmul %142, %138, %cst_62 {dimension_numbers = #tpu.dot_dimension_numbers<[1], [1], [0], [0], [0, 0, 1, 0], [], []>} : vector<16x32xbf16>, vector<128x32xbf16>, vector<16x128xf32> -> vector<16x128xf32>
    %cst_63 = arith.constant dense<0xFF800000> : vector<16xf32>
    %144 = vector.multi_reduction <maximumf>, %143, %cst_63 [1] : vector<16x128xf32> to vector<16xf32>
    %145 = vector.shape_cast %144 : vector<16xf32> to vector<16x1xf32>
    %146 = vector.broadcast %145 : vector<16x1xf32> to vector<16x128xf32>
    %147 = arith.subf %143, %146 : vector<16x128xf32>
    %148 = math.exp %147 : vector<16x128xf32>
    %cst_64 = arith.constant dense<0.000000e+00> : vector<16x128xf32>
    %149 = tpu.matmul %148, %4, %cst_64 {dimension_numbers = #tpu.dot_dimension_numbers<[1], [0], [0], [1], [0, 0, 1, 1], [], []>} : vector<16x128xf32>, vector<128x128xf32>, vector<16x128xf32> -> vector<16x128xf32>
    %150 = tpu.reciprocal %149 {approx = true} : vector<16x128xf32> -> vector<16x128xf32>
    %151 = arith.mulf %3, %150 : vector<16x128xf32>
    %152 = arith.mulf %148, %151 : vector<16x128xf32>
    %153 = arith.truncf %152 : vector<16x128xf32> to vector<16x128xbf16>
    %cst_65 = arith.constant dense<0.000000e+00> : vector<16x32xf32>
    %154 = tpu.matmul %153, %141, %cst_65 {dimension_numbers = #tpu.dot_dimension_numbers<[1], [0], [0], [1], [0, 0, 1, 1], [], []>} : vector<16x128xbf16>, vector<128x32xbf16>, vector<16x32xf32> -> vector<16x32xf32>
    %155 = arith.truncf %154 : vector<16x32xf32> to vector<16x32xbf16>
    %cst_66 = arith.constant dense<0.000000e+00> : vector<16x32xf32>
    %156 = tpu.matmul %155, %113, %cst_66 {dimension_numbers = #tpu.dot_dimension_numbers<[1], [1], [0], [0], [0, 0, 1, 0], [], []>} : vector<16x32xbf16>, vector<32x32xbf16>, vector<16x32xf32> -> vector<16x32xf32>
    %157 = vector.broadcast %119 : vector<1x32xf32> to vector<16x32xf32>
    %158 = arith.addf %156, %157 : vector<16x32xf32>
    %159 = arith.addf %109, %158 : vector<16x32xf32>
    %cst_67 = arith.constant dense<0.000000e+00> : vector<16xf32>
    %160 = vector.multi_reduction <add>, %159, %cst_67 [1] : vector<16x32xf32> to vector<16xf32>
    %161 = vector.shape_cast %160 : vector<16xf32> to vector<16x1xf32>
    %cst_68 = arith.constant 3.200000e+01 : f32
    %162 = vector.broadcast %cst_68 : f32 to vector<16x1xf32>
    %163 = arith.divf %161, %162 : vector<16x1xf32>
    %164 = vector.broadcast %163 : vector<16x1xf32> to vector<16x32xf32>
    %165 = arith.subf %159, %164 : vector<16x32xf32>
    %166 = arith.mulf %165, %165 : vector<16x32xf32>
    %cst_69 = arith.constant dense<0.000000e+00> : vector<16xf32>
    %167 = vector.multi_reduction <add>, %166, %cst_69 [1] : vector<16x32xf32> to vector<16xf32>
    %168 = vector.shape_cast %167 : vector<16xf32> to vector<16x1xf32>
    %cst_70 = arith.constant 3.200000e+01 : f32
    %169 = vector.broadcast %cst_70 : f32 to vector<16x1xf32>
    %170 = arith.divf %168, %169 : vector<16x1xf32>
    %171 = vector.broadcast %163 : vector<16x1xf32> to vector<16x32xf32>
    %172 = arith.subf %159, %171 : vector<16x32xf32>
    %cst_71 = arith.constant 9.99999974E-6 : f32
    %173 = vector.broadcast %cst_71 : f32 to vector<16x1xf32>
    %174 = arith.addf %170, %173 : vector<16x1xf32>
    %175 = math.rsqrt %174 : vector<16x1xf32>
    %176 = vector.broadcast %175 : vector<16x1xf32> to vector<16x32xf32>
    %177 = arith.mulf %172, %176 : vector<16x32xf32>
    %178 = vector.broadcast %122 : vector<1x32xf32> to vector<16x32xf32>
    %179 = arith.mulf %177, %178 : vector<16x32xf32>
    %180 = vector.broadcast %123 : vector<1x32xf32> to vector<16x32xf32>
    %181 = arith.addf %179, %180 : vector<16x32xf32>
    %182 = arith.truncf %181 : vector<16x32xf32> to vector<16x32xbf16>
    %cst_72 = arith.constant dense<0.000000e+00> : vector<16x64xf32>
    %183 = tpu.matmul %182, %114, %cst_72 {dimension_numbers = #tpu.dot_dimension_numbers<[1], [1], [0], [0], [0, 0, 1, 0], [], []>} : vector<16x32xbf16>, vector<64x32xbf16>, vector<16x64xf32> -> vector<16x64xf32>
    %184 = vector.broadcast %120 : vector<1x64xf32> to vector<16x64xf32>
    %185 = arith.addf %183, %184 : vector<16x64xf32>
    %cst_73 = arith.constant 0.000000e+00 : f32
    %186 = vector.broadcast %cst_73 : f32 to vector<16x64xf32>
    %187 = arith.maximumf %185, %186 : vector<16x64xf32>
    %188 = arith.truncf %187 : vector<16x64xf32> to vector<16x64xbf16>
    %cst_74 = arith.constant dense<0.000000e+00> : vector<16x32xf32>
    %189 = tpu.matmul %188, %115, %cst_74 {dimension_numbers = #tpu.dot_dimension_numbers<[1], [1], [0], [0], [0, 0, 1, 0], [], []>} : vector<16x64xbf16>, vector<32x64xbf16>, vector<16x32xf32> -> vector<16x32xf32>
    %190 = arith.addf %181, %189 : vector<16x32xf32>
    %191 = vector.broadcast %121 : vector<1x32xf32> to vector<16x32xf32>
    %192 = arith.addf %190, %191 : vector<16x32xf32>
    %cst_75 = arith.constant dense<0.000000e+00> : vector<16xf32>
    %193 = vector.multi_reduction <add>, %192, %cst_75 [1] : vector<16x32xf32> to vector<16xf32>
    %194 = vector.shape_cast %193 : vector<16xf32> to vector<16x1xf32>
    %cst_76 = arith.constant 3.200000e+01 : f32
    %195 = vector.broadcast %cst_76 : f32 to vector<16x1xf32>
    %196 = arith.divf %194, %195 : vector<16x1xf32>
    %197 = vector.broadcast %196 : vector<16x1xf32> to vector<16x32xf32>
    %198 = arith.subf %192, %197 : vector<16x32xf32>
    %199 = arith.mulf %198, %198 : vector<16x32xf32>
    %cst_77 = arith.constant dense<0.000000e+00> : vector<16xf32>
    %200 = vector.multi_reduction <add>, %199, %cst_77 [1] : vector<16x32xf32> to vector<16xf32>
    %201 = vector.shape_cast %200 : vector<16xf32> to vector<16x1xf32>
    %cst_78 = arith.constant 3.200000e+01 : f32
    %202 = vector.broadcast %cst_78 : f32 to vector<16x1xf32>
    %203 = arith.divf %201, %202 : vector<16x1xf32>
    %204 = vector.broadcast %196 : vector<16x1xf32> to vector<16x32xf32>
    %205 = arith.subf %192, %204 : vector<16x32xf32>
    %cst_79 = arith.constant 9.99999974E-6 : f32
    %206 = vector.broadcast %cst_79 : f32 to vector<16x1xf32>
    %207 = arith.addf %203, %206 : vector<16x1xf32>
    %208 = math.rsqrt %207 : vector<16x1xf32>
    %209 = vector.broadcast %208 : vector<16x1xf32> to vector<16x32xf32>
    %210 = arith.mulf %205, %209 : vector<16x32xf32>
    %211 = vector.broadcast %124 : vector<1x32xf32> to vector<16x32xf32>
    %212 = arith.mulf %210, %211 : vector<16x32xf32>
    %213 = vector.broadcast %125 : vector<1x32xf32> to vector<16x32xf32>
    %214 = arith.addf %212, %213 : vector<16x32xf32>
    %c448 = arith.constant 448 : index
    %c0_80 = arith.constant 0 : index
    %215 = vector.load %arg2[%c448, %c0_80] : memref<464x128xbf16, #tpu.memory_space<vmem>>, vector<16x32xbf16>
    %c20 = arith.constant 20 : index
    %c0_81 = arith.constant 0 : index
    %216 = vector.load %arg3[%c20, %c0_81] : memref<296x128xf32, #tpu.memory_space<vmem>>, vector<1x16xf32>
    %217 = arith.truncf %214 : vector<16x32xf32> to vector<16x32xbf16>
    %cst_82 = arith.constant dense<0.000000e+00> : vector<16x16xf32>
    %218 = tpu.matmul %217, %215, %cst_82 {dimension_numbers = #tpu.dot_dimension_numbers<[1], [1], [0], [0], [0, 0, 1, 0], [], []>} : vector<16x32xbf16>, vector<16x32xbf16>, vector<16x16xf32> -> vector<16x16xf32>
    %219 = vector.broadcast %216 : vector<1x16xf32> to vector<16x16xf32>
    %220 = arith.addf %218, %219 : vector<16x16xf32>
    %221 = vector.shape_cast %220 : vector<16x16xf32> to vector<2x8x16xf32>
    %c0_83 = arith.constant 0 : index
    %c0_84 = arith.constant 0 : index
    %c0_85 = arith.constant 0 : index
    %222 = vector.load %arg4[%c0_83, %c0_84, %c0_85] : memref<2x8x16xf32, #tpu.memory_space<vmem>>, vector<2x8x16xf32>
    tpu.vector_store %arg4[%c0_83, %c0_84, %c0_85], %221 {strides = array<i32>} : memref<2x8x16xf32, #tpu.memory_space<vmem>>, vector<2x8x16xf32>,
    return
  }
  func.func @transform_0(%arg0: i32) -> (i32, i32, i32) {
    %c0_i32 = arith.constant 0 : i32
    %c0_i32_0 = arith.constant 0 : i32
    %c0_i32_1 = arith.constant 0 : i32
    %c0_i32_2 = arith.constant 0 : i32
    return %c0_i32, %c0_i32_0, %c0_i32_1 : i32, i32, i32
  }
  func.func @transform_1(%arg0: i32) -> (i32, i32) {
    %c0_i32 = arith.constant 0 : i32
    %c0_i32_0 = arith.constant 0 : i32
    %c0_i32_1 = arith.constant 0 : i32
    return %c0_i32, %c0_i32_0 : i32, i32
  }
  func.func @transform_2(%arg0: i32) -> (i32, i32) {
    %c0_i32 = arith.constant 0 : i32
    %c0_i32_0 = arith.constant 0 : i32
    %c0_i32_1 = arith.constant 0 : i32
    return %c0_i32, %c0_i32_0 : i32, i32
  }
  func.func @transform_3(%arg0: i32) -> (i32, i32, i32) {
    %c0_i32 = arith.constant 0 : i32
    %c0_i32_0 = arith.constant 0 : i32
    %c0_i32_1 = arith.constant 0 : i32
    %c0_i32_2 = arith.constant 0 : i32
    return %c0_i32, %c0_i32_0, %c0_i32_1 : i32, i32, i32
  }
}

</mosaic_0001>

<llo_original>
// kernel: tpu_custom_call.1
$region0: #{tpu_custom_call.1}
  #allocation0 [shape = 'u32[]', space=smem, size = 0x4, offset = 0x4, fixed_abs, tag = 'smem constant byte address 0x4 - core index']
  #allocation1 [shape = 'u32[144,128]{1,0:T(1,128)}', space=vmem, size = 0x12000, scoped, tag = 'internal scratch']
  %s0 = inlined_call_operand.hbm [shape: f32[2,8,32], index: 0, kind: input, shape index: {}]
  %s1 = inlined_call_operand.hbm [shape: bf16[464,128], index: 1, kind: input, shape index: {}]
  %s2 = inlined_call_operand.hbm [shape: f32[296,128], index: 2, kind: input, shape index: {}]
  %s3 = inlined_call_operand.hbm [shape: f32[2,8,16], index: 3, kind: output, shape index: {}]
  %s4 = sld [smem:[#allocation0]]
  $region34: #{tpu_custom_call.1} parent=0
    _
  %s6 = ssub.s32 1, %s4
  %s7 = scalar_select 0, %s6, %s4
  $region1: #{tpu_custom_call.1} parent=0
    #allocation2 [shape = 'u8[8192]{0}', space=vmem, size = 0x2000, scoped, tag = 'input window, operand 0, single buffered']
    #allocation3 [shape = 's32[1]{0}', space=sflag, size = 0x4, scoped, tag = 'scoped memory for tpu_custom_call.1']
    #allocation4 [shape = 's32[1]{0}', space=sflag, size = 0x4, scoped, tag = 'scoped memory for tpu_custom_call.1']
    #allocation5 [shape = 'u8[118784]{0}', space=vmem, size = 0x1d000, scoped, tag = 'input window, operand 1, single buffered']
    #allocation6 [shape = 's32[1]{0}', space=sflag, size = 0x4, scoped, tag = 'scoped memory for tpu_custom_call.1']
    #allocation7 [shape = 'u8[151552]{0}', space=vmem, size = 0x25000, scoped, tag = 'input window, operand 2, single buffered']
    #allocation8 [shape = 'u8[8192]{0}', space=vmem, size = 0x2000, scoped, tag = 'output window, operand 0, single buffered']
    %8 = vsyncpa [#allocation3], 0
    %9 = vsyncpa [#allocation6], 0
    %10 = vsyncpa [#allocation4], 0
    // Predicated region
    $region2: #{tpu_custom_call.1} parent=1 // pred_check
      _
    $region3: #{tpu_custom_call.1} parent=1 // pred_check_branch
      %12 = sbr.rel (0) target = $region5
    $region4: #{tpu_custom_call.1} parent=1 // pred_region
      %s14 = ssub.s32 256, 256
      %15 = vsyncadd [#allocation3], %s14
      %s16 = sshll.u32 [#allocation2], 4
      %s17 = int_to_ptr.vmem [resolvable:$true] %s16
      %22 = dma.hbm_to_vmem [thread:$0]  %s0, 256, %s17, [#allocation3], 128, 128, 8
    $region5: #{tpu_custom_call.1} parent=1 // pred_fallthru
      _
    // Predicated region
    $region6: #{tpu_custom_call.1} parent=1 // pred_check
      _
    $region7: #{tpu_custom_call.1} parent=1 // pred_check_branch
      %24 = sbr.rel (0) target = $region9
    $region8: #{tpu_custom_call.1} parent=1 // pred_region
      %s26 = ssub.s32 3712, 3712
      %27 = vsyncadd [#allocation6], %s26
      %s28 = sshll.u32 [#allocation5], 4
      %s29 = int_to_ptr.vmem [resolvable:$true] %s28
      %34 = dma.hbm_to_vmem [thread:$0]  %s1, 3712, %s29, [#allocation6], 64, 64, 4
    $region9: #{tpu_custom_call.1} parent=1 // pred_fallthru
      _
    // Predicated region
    $region10: #{tpu_custom_call.1} parent=1 // pred_check
      _
    $region11: #{tpu_custom_call.1} parent=1 // pred_check_branch
      %36 = sbr.rel (0) target = $region13
    $region12: #{tpu_custom_call.1} parent=1 // pred_region
      %s38 = ssub.s32 4736, 4736
      %39 = vsyncadd [#allocation6], %s38
      %s40 = sshll.u32 [#allocation7], 4
      %s41 = int_to_ptr.vmem [resolvable:$true] %s40
      %46 = dma.hbm_to_vmem [thread:$0]  %s2, 4736, %s41, [#allocation6], 128, 128, 8
    $region13: #{tpu_custom_call.1} parent=1 // pred_fallthru
      _
    // Predicated region
    $region14: #{tpu_custom_call.1} parent=1 // pred_check
      _
    $region15: #{tpu_custom_call.1} parent=1 // pred_check_branch
      %48 = sbr.rel (0) target = $region17
    $region16: #{tpu_custom_call.1} parent=1 // pred_region
      %49 = dma.done [#allocation3], 256
    $region17: #{tpu_custom_call.1} parent=1 // pred_fallthru
      _
    // Predicated region
    $region18: #{tpu_custom_call.1} parent=1 // pred_check
      _
    $region19: #{tpu_custom_call.1} parent=1 // pred_check_branch
      %51 = sbr.rel (0) target = $region21
    $region20: #{tpu_custom_call.1} parent=1 // pred_region
      %52 = dma.done [#allocation6], 3712
    $region21: #{tpu_custom_call.1} parent=1 // pred_fallthru
      _
    // Predicated region
    $region22: #{tpu_custom_call.1} parent=1 // pred_check
      _
    $region23: #{tpu_custom_call.1} parent=1 // pred_check_branch
      %54 = sbr.rel (0) target = $region25
    $region24: #{tpu_custom_call.1} parent=1 // pred_region
      %55 = dma.done [#allocation6], 4736
    $region25: #{tpu_custom_call.1} parent=1 // pred_fallthru
      _
    %v57 = vld [vmem:[#allocation2] sm:$0xff]
    %v58 = vld [vmem:[#allocation2 + $0x8] sm:$0xff]
    %v59 = vld [vmem:[#allocation7 + $0x18] sm:$0xff]
    %v60 = vld [vmem:[#allocation7 + $0x20] sm:$0xff]
    %v61 = vld [vmem:[#allocation7 + $0x28] sm:$0xff]
    %v62 = vld [vmem:[#allocation7 + $0x30] sm:$0xff]
    %v63 = vld [vmem:[#allocation7 + $0x38] sm:$0xff]
    %v64 = vld [vmem:[#allocation7 + $0x40] sm:$0xff]
    %v65 = vld [vmem:[#allocation7 + $0x48] sm:$0xff]
    %v66 = vld [vmem:[#allocation7 + $0x50] sm:$0xff]
    %v67 = vld [vmem:[#allocation7 + $0x58] sm:$0xff]
    %v68 = vld [vmem:[#allocation7 + $0x60] sm:$0xff]
    %v69 = vld [vmem:[#allocation7 + $0x68] sm:$0xff]
    %v70 = vld [vmem:[#allocation7 + $0x70] sm:$0xff]
    %v71 = vld [vmem:[#allocation7 + $0x78] sm:$0xff]
    %v72 = vld [vmem:[#allocation7 + $0x80] sm:$0xff]
    %v73 = vld [vmem:[#allocation7 + $0x88] sm:$0xff]
    %v74 = vld [vmem:[#allocation7 + $0x90] sm:$0xff]
    %v75 = vld [vmem:[#allocation7 + $0x98] sm:$0xff]
    %v76 = vld [vmem:[#allocation7 + $0xa0] sm:$0xff]
    %v77 = vld [vmem:[#allocation7 + $0xa8] sm:$0xff]
    %v78 = vld [vmem:[#allocation7 + $0xb0] sm:$0xff]
    %v79 = vld [vmem:[#allocation7 + $0xb8] sm:$0xff]
    %v80 = vld [vmem:[#allocation7 + $0xc0] sm:$0xff]
    %v81 = vld [vmem:[#allocation7 + $0xc8] sm:$0xff]
    %v82 = vld [vmem:[#allocation7 + $0xd0] sm:$0xff]
    %v83 = vld [vmem:[#allocation7 + $0xd8] sm:$0xff]
    %v84 = vld [vmem:[#allocation7 + $0xe0] sm:$0xff]
    %v85 = vld [vmem:[#allocation7 + $0xe8] sm:$0xff]
    %v86 = vld [vmem:[#allocation7 + $0xf0] sm:$0xff]
    %v87 = vld [vmem:[#allocation7 + $0xf8] sm:$0xff]
    %v88 = vld [vmem:[#allocation7 + $0x100] sm:$0xff]
    %v89 = vld [vmem:[#allocation7 + $0x108] sm:$0xff]
    %v90 = vld [vmem:[#allocation7 + $0x110] sm:$0xff]
    %v91 = vld [vmem:[#allocation7 + $0x118] sm:$0xff]
    %v92 = vld [vmem:[#allocation7 + $0x120] sm:$0xff]
    %v93 = vld [vmem:[#allocation5] sm:$0xf]
    %v94 = vld [vmem:[#allocation5 + $0x4] sm:$0xf]
    %v95 = vld [vmem:[#allocation5 + $0x8] sm:$0xf]
    %v96 = vld [vmem:[#allocation5 + $0xc] sm:$0xf]
    %v97 = vld [vmem:[#allocation5 + $0x10] sm:$0xf]
    %v98 = vld [vmem:[#allocation5 + $0x14] sm:$0xf]
    %v99 = vld [vmem:[#allocation5 + $0x18] sm:$0xf]
    %v100 = vld [vmem:[#allocation5 + $0x1c] sm:$0xf]
    %v101 = vld [vmem:[#allocation5 + $0x20] sm:$0xf]
    %v102 = vld [vmem:[#allocation5 + $0x24] sm:$0xf]
    %v103 = vld [vmem:[#allocation5 + $0x28] sm:$0xf]
    %v104 = vld [vmem:[#allocation5 + $0x2c] sm:$0xf]
    %v105 = vld [vmem:[#allocation5 + $0x30] sm:$0xf]
    %v106 = vld [vmem:[#allocation5 + $0x34] sm:$0xf]
    %v107 = vld [vmem:[#allocation5 + $0x38] sm:$0xf]
    %v108 = vld [vmem:[#allocation5 + $0x3c] sm:$0xf]
    %v109 = vld [vmem:[#allocation5 + $0x40] sm:$0xf]
    %v110 = vld [vmem:[#allocation5 + $0x44] sm:$0xf]
    %v111 = vld [vmem:[#allocation5 + $0x48] sm:$0xf]
    %v112 = vld [vmem:[#allocation5 + $0x4c] sm:$0xf]
    %v113 = vld [vmem:[#allocation5 + $0x50] sm:$0xf]
    %v114 = vld [vmem:[#allocation5 + $0x54] sm:$0xf]
    %v115 = vld [vmem:[#allocation5 + $0x58] sm:$0xf]
    %v116 = vld [vmem:[#allocation5 + $0x5c] sm:$0xf]
    %v117 = vld [vmem:[#allocation5 + $0x60] sm:$0xf]
    %v118 = vld [vmem:[#allocation5 + $0x64] sm:$0xf]
    %v119 = vld [vmem:[#allocation5 + $0x68] sm:$0xf]
    %v120 = vld [vmem:[#allocation5 + $0x6c] sm:$0xf]
    %v121 = vld [vmem:[#allocation7] sm:$0x1]
    %v122 = vld [vmem:[#allocation7 + $0x1] sm:$0x1]
    %v123 = vld [vmem:[#allocation7 + $0x2] sm:$0x1]
    %v124 = vld [vmem:[#allocation7 + $0x3] sm:$0x1]
    %v125 = vld [vmem:[#allocation7 + $0x4] sm:$0x1]
    %v126 = vld [vmem:[#allocation7 + $0x5] sm:$0x1]
    %v127 = vld [vmem:[#allocation7 + $0x6] sm:$0x1]
    %v128 = vld [vmem:[#allocation7 + $0x7] sm:$0x1]
    %v129 = vld [vmem:[#allocation7 + $0x8] sm:$0x1]
    %v130 = vld [vmem:[#allocation7 + $0x9] sm:$0x1]
    %v131 = vpack.c.bf16 %v58, %v57
    %v132 = vlaneseq
    %v133 = vshrl.u32 %v132, 7
    %v134 = vsub.s32 0, %v133
    %v135 = vrot.slane %v121, %v134
    %v140 = vunpack.c.l.b16 %v93
    %v141 = vunpack.c.l.b16 %v94
    %v142 = vunpack.c.l.b16 %v95
    %v143 = vunpack.c.l.b16 %v96
    %v144 = vpack.c.b16 %v141, %v140
    %v145 = vpack.c.b16 %v143, %v142
    %vm146 = vcmask 261120
    %v148 = vsel %vm146, %v131, 0
    %v151 = vsel %vm146, %v144, 0
    %v154 = vsel %vm146, %v145, 0
    %156 = vmatprep.subr.bf16.mxu0 0
    %157 = vmatpush1.bf16.xpose.msra.mxu0 %v151
    %158 = vmatprep.subr.bf16.mxu0 0
    %159 = vmatpush1.bf16.xpose.msra.mxu0 %v154
    %160 = vmatprep.subr.bf16.mxu0 0
    %161 = vmatpush1.bf16.xpose.msra.mxu0 0
    %162 = vmatprep.subr.bf16.mxu0 0
    %163 = vmatpush1.bf16.xpose.msra.mxu0 0
    %164 = vmatprep.subr.bf16.mxu0 0
    %165 = vmatpush1.bf16.xpose.msra.mxu0 0
    %166 = vmatprep.subr.bf16.mxu0 0
    %167 = vmatpush1.bf16.xpose.msra.mxu0 0
    %168 = vmatprep.subr.bf16.mxu0 0
    %169 = vmatpush1.bf16.xpose.msra.mxu0 0
    %170 = vmatprep.subr.bf16.mxu0 0
    %171 = vmatpush1.bf16.xpose.msra.mxu0 0
    %172 = vmatprep.subr.bf16.mxu0 0
    %173 = vmatpush1.bf16.xpose.msra.mxu0 0
    %174 = vmatprep.subr.bf16.mxu0 0
    %175 = vmatpush1.bf16.xpose.msra.mxu0 0
    %176 = vmatprep.subr.bf16.mxu0 0
    %177 = vmatpush1.bf16.xpose.msra.mxu0 0
    %178 = vmatprep.subr.bf16.mxu0 0
    %179 = vmatpush1.bf16.xpose.msra.mxu0 0
    %180 = vmatprep.subr.bf16.mxu0 0
    %181 = vmatpush1.bf16.xpose.msra.mxu0 0
    %182 = vmatprep.subr.bf16.mxu0 0
    %183 = vmatpush1.bf16.xpose.msra.mxu0 0
    %184 = vmatprep.subr.bf16.mxu0 0
    %185 = vmatpush1.bf16.xpose.msra.mxu0 0
    %186 = vmatprep.subr.bf16.mxu0 0
    %187 = vmatpush1.bf16.xpose.msra.mxu0 0
    %188 = vmatprep.mubr.bf16.mxu0 0
    %189 = vmatmul.mubr.bf16.gmra.mrb[0].mxu0 %v148
    %v190 = vpop.f32.mrb[0].mxu0
    %v191 = vadd.f32 %v135, %v190
    %v192 = vpop.f32.mrb[0].mxu0
    %v193 = vpop.f32.mrb[0].mxu0
    %v194 = vadd.f32 %v135, %v193
    %v195 = vpop.f32.mrb[0].mxu0
    %196 = vdwg.mxu0
    %v197 = vlaneseq
    %v198 = vshrl.u32 %v197, 7
    %v199 = vsub.s32 0, %v198
    %v200 = vrot.slane %v122, %v199
    %v205 = vunpack.c.l.b16 %v97
    %v206 = vunpack.c.l.b16 %v98
    %v207 = vunpack.c.l.b16 %v99
    %v208 = vunpack.c.l.b16 %v100
    %v209 = vpack.c.b16 %v206, %v205
    %v210 = vpack.c.b16 %v208, %v207
    %v212 = vsel %vm146, %v209, 0
    %v215 = vsel %vm146, %v210, 0
    %217 = vmatprep.subr.bf16.mxu0 0
    %218 = vmatpush1.bf16.xpose.msra.mxu0 %v212
    %219 = vmatprep.subr.bf16.mxu0 0
    %220 = vmatpush1.bf16.xpose.msra.mxu0 %v215
    %221 = vmatprep.subr.bf16.mxu0 0
    %222 = vmatpush1.bf16.xpose.msra.mxu0 0
    %223 = vmatprep.subr.bf16.mxu0 0
    %224 = vmatpush1.bf16.xpose.msra.mxu0 0
    %225 = vmatprep.subr.bf16.mxu0 0
    %226 = vmatpush1.bf16.xpose.msra.mxu0 0
    %227 = vmatprep.subr.bf16.mxu0 0
    %228 = vmatpush1.bf16.xpose.msra.mxu0 0
    %229 = vmatprep.subr.bf16.mxu0 0
    %230 = vmatpush1.bf16.xpose.msra.mxu0 0
    %231 = vmatprep.subr.bf16.mxu0 0
    %232 = vmatpush1.bf16.xpose.msra.mxu0 0
    %233 = vmatprep.subr.bf16.mxu0 0
    %234 = vmatpush1.bf16.xpose.msra.mxu0 0
    %235 = vmatprep.subr.bf16.mxu0 0
    %236 = vmatpush1.bf16.xpose.msra.mxu0 0
    %237 = vmatprep.subr.bf16.mxu0 0
    %238 = vmatpush1.bf16.xpose.msra.mxu0 0
    %239 = vmatprep.subr.bf16.mxu0 0
    %240 = vmatpush1.bf16.xpose.msra.mxu0 0
    %241 = vmatprep.subr.bf16.mxu0 0
    %242 = vmatpush1.bf16.xpose.msra.mxu0 0
    %243 = vmatprep.subr.bf16.mxu0 0
    %244 = vmatpush1.bf16.xpose.msra.mxu0 0
    %245 = vmatprep.subr.bf16.mxu0 0
    %246 = vmatpush1.bf16.xpose.msra.mxu0 0
    %247 = vmatprep.subr.bf16.mxu0 0
    %248 = vmatpush1.bf16.xpose.msra.mxu0 0
    %249 = vmatprep.mubr.bf16.mxu0 0
    %250 = vmatmul.mubr.bf16.gmra.mrb[0].mxu0 %v148
    %v251 = vpop.f32.mrb[0].mxu0
    %v252 = vadd.f32 %v200, %v251
    %v253 = vpop.f32.mrb[0].mxu0
    %v254 = vpop.f32.mrb[0].mxu0
    %v255 = vadd.f32 %v200, %v254
    %v256 = vpop.f32.mrb[0].mxu0
    %257 = vdwg.mxu0
    %v258 = vlaneseq
    %v259 = vshrl.u32 %v258, 7
    %v260 = vsub.s32 0, %v259
    %v261 = vrot.slane %v123, %v260
    %v266 = vunpack.c.l.b16 %v101
    %v267 = vunpack.c.l.b16 %v102
    %v268 = vunpack.c.l.b16 %v103
    %v269 = vunpack.c.l.b16 %v104
    %v270 = vpack.c.b16 %v267, %v266
    %v271 = vpack.c.b16 %v269, %v268
    %v273 = vsel %vm146, %v270, 0
    %v276 = vsel %vm146, %v271, 0
    %278 = vmatprep.subr.bf16.mxu0 0
    %279 = vmatpush1.bf16.xpose.msra.mxu0 %v273
    %280 = vmatprep.subr.bf16.mxu0 0
    %281 = vmatpush1.bf16.xpose.msra.mxu0 %v276
    %282 = vmatprep.subr.bf16.mxu0 0
    %283 = vmatpush1.bf16.xpose.msra.mxu0 0
    %284 = vmatprep.subr.bf16.mxu0 0
    %285 = vmatpush1.bf16.xpose.msra.mxu0 0
    %286 = vmatprep.subr.bf16.mxu0 0
    %287 = vmatpush1.bf16.xpose.msra.mxu0 0
    %288 = vmatprep.subr.bf16.mxu0 0
    %289 = vmatpush1.bf16.xpose.msra.mxu0 0
    %290 = vmatprep.subr.bf16.mxu0 0
    %291 = vmatpush1.bf16.xpose.msra.mxu0 0
    %292 = vmatprep.subr.bf16.mxu0 0
    %293 = vmatpush1.bf16.xpose.msra.mxu0 0
    %294 = vmatprep.subr.bf16.mxu0 0
    %295 = vmatpush1.bf16.xpose.msra.mxu0 0
    %296 = vmatprep.subr.bf16.mxu0 0
    %297 = vmatpush1.bf16.xpose.msra.mxu0 0
    %298 = vmatprep.subr.bf16.mxu0 0
    %299 = vmatpush1.bf16.xpose.msra.mxu0 0
    %300 = vmatprep.subr.bf16.mxu0 0
    %301 = vmatpush1.bf16.xpose.msra.mxu0 0
    %302 = vmatprep.subr.bf16.mxu0 0
    %303 = vmatpush1.bf16.xpose.msra.mxu0 0
    %304 = vmatprep.subr.bf16.mxu0 0
    %305 = vmatpush1.bf16.xpose.msra.mxu0 0
    %306 = vmatprep.subr.bf16.mxu0 0
    %307 = vmatpush1.bf16.xpose.msra.mxu0 0
    %308 = vmatprep.subr.bf16.mxu0 0
    %309 = vmatpush1.bf16.xpose.msra.mxu0 0
    %310 = vmatprep.mubr.bf16.mxu0 0
    %311 = vmatmul.mubr.bf16.gmra.mrb[0].mxu0 %v148
    %v312 = vpop.f32.mrb[0].mxu0
    %v313 = vadd.f32 %v261, %v312
    %v314 = vpop.f32.mrb[0].mxu0
    %v315 = vpop.f32.mrb[0].mxu0
    %v316 = vadd.f32 %v261, %v315
    %v317 = vpop.f32.mrb[0].mxu0
    %318 = vdwg.mxu0
    %v319 = vmul.f32 %v252, %v59
    %v320 = vmul.f32 %v255, %v60
    %v321 = vmul.f32 %v252, %v61
    %v322 = vmul.f32 %v255, %v62
    %v323 = vmul.f32 %v252, %v63
    %v324 = vmul.f32 %v255, %v64
    %v325 = vmul.f32 %v252, %v65
    %v326 = vmul.f32 %v255, %v66
    %v327 = vmul.f32 %v252, %v67
    %v328 = vmul.f32 %v255, %v68
    %v329 = vmul.f32 %v252, %v69
    %v330 = vmul.f32 %v255, %v70
    %v331 = vmul.f32 %v252, %v71
    %v332 = vmul.f32 %v255, %v72
    %v333 = vmul.f32 %v252, %v73
    %v334 = vmul.f32 %v255, %v74
    %v335 = vpack.c.bf16 %v320, %v319
    %v336 = vpack.c.bf16 %v322, %v321
    %v337 = vpack.c.bf16 %v324, %v323
    %v338 = vpack.c.bf16 %v326, %v325
    %v339 = vpack.c.bf16 %v328, %v327
    %v340 = vpack.c.bf16 %v330, %v329
    %v341 = vpack.c.bf16 %v332, %v331
    %v342 = vpack.c.bf16 %v334, %v333
    %v343 = vmul.f32 %v313, %v59
    %v344 = vmul.f32 %v316, %v60
    %v345 = vmul.f32 %v313, %v61
    %v346 = vmul.f32 %v316, %v62
    %v347 = vmul.f32 %v313, %v63
    %v348 = vmul.f32 %v316, %v64
    %v349 = vmul.f32 %v313, %v65
    %v350 = vmul.f32 %v316, %v66
    %v351 = vmul.f32 %v313, %v67
    %v352 = vmul.f32 %v316, %v68
    %v353 = vmul.f32 %v313, %v69
    %v354 = vmul.f32 %v316, %v70
    %v355 = vmul.f32 %v313, %v71
    %v356 = vmul.f32 %v316, %v72
    %v357 = vmul.f32 %v313, %v73
    %v358 = vmul.f32 %v316, %v74
    %v359 = vpack.c.bf16 %v344, %v343
    %v360 = vpack.c.bf16 %v346, %v345
    %v361 = vpack.c.bf16 %v348, %v347
    %v362 = vpack.c.bf16 %v350, %v349
    %v363 = vpack.c.bf16 %v352, %v351
    %v364 = vpack.c.bf16 %v354, %v353
    %v365 = vpack.c.bf16 %v356, %v355
    %v366 = vpack.c.bf16 %v358, %v357
    %v367 = vpack.c.bf16 %v194, %v191
    %v369 = vsel %vm146, %v367, 0
    %v372 = vsel %vm146, %v335, 0
    %v375 = vsel %vm146, %v336, 0
    %v378 = vsel %vm146, %v337, 0
    %v381 = vsel %vm146, %v338, 0
    %v384 = vsel %vm146, %v339, 0
    %v387 = vsel %vm146, %v340, 0
    %v390 = vsel %vm146, %v341, 0
    %v393 = vsel %vm146, %v342, 0
    %395 = vmatprep.subr.bf16.mxu0 0
    %396 = vmatpush1.bf16.xpose.msra.mxu0 %v372
    %397 = vmatprep.subr.bf16.mxu0 0
    %398 = vmatpush1.bf16.xpose.msra.mxu0 %v375
    %399 = vmatprep.subr.bf16.mxu0 0
    %400 = vmatpush1.bf16.xpose.msra.mxu0 %v378
    %401 = vmatprep.subr.bf16.mxu0 0
    %402 = vmatpush1.bf16.xpose.msra.mxu0 %v381
    %403 = vmatprep.subr.bf16.mxu0 0
    %404 = vmatpush1.bf16.xpose.msra.mxu0 %v384
    %405 = vmatprep.subr.bf16.mxu0 0
    %406 = vmatpush1.bf16.xpose.msra.mxu0 %v387
    %407 = vmatprep.subr.bf16.mxu0 0
    %408 = vmatpush1.bf16.xpose.msra.mxu0 %v390
    %409 = vmatprep.subr.bf16.mxu0 0
    %410 = vmatpush1.bf16.xpose.msra.mxu0 %v393
    %411 = vmatprep.subr.bf16.mxu0 0
    %412 = vmatpush1.bf16.xpose.msra.mxu0 0
    %413 = vmatprep.subr.bf16.mxu0 0
    %414 = vmatpush1.bf16.xpose.msra.mxu0 0
    %415 = vmatprep.subr.bf16.mxu0 0
    %416 = vmatpush1.bf16.xpose.msra.mxu0 0
    %417 = vmatprep.subr.bf16.mxu0 0
    %418 = vmatpush1.bf16.xpose.msra.mxu0 0
    %419 = vmatprep.subr.bf16.mxu0 0
    %420 = vmatpush1.bf16.xpose.msra.mxu0 0
    %421 = vmatprep.subr.bf16.mxu0 0
    %422 = vmatpush1.bf16.xpose.msra.mxu0 0
    %423 = vmatprep.subr.bf16.mxu0 0
    %424 = vmatpush1.bf16.xpose.msra.mxu0 0
    %425 = vmatprep.subr.bf16.mxu0 0
    %426 = vmatpush1.bf16.xpose.msra.mxu0 0
    %427 = vmatprep.mubr.bf16.mxu0 0
    %428 = vmatmul.mubr.bf16.gmra.mrb[0].mxu0 %v369
    %v429 = vpop.f32.mrb[0].mxu0
    %v430 = vadd.f32 0.0, %v429
    %v431 = vpop.f32.mrb[0].mxu0
    %v432 = vpop.f32.mrb[0].mxu0
    %v433 = vadd.f32 0.0, %v432
    %v434 = vpop.f32.mrb[0].mxu0
    %435 = vdwg.mxu0
    %436 = vmax.xlane.f32.xlu0 %v430
    %v437 = vpop.xlane.xlu0 %436
    %438 = vmax.xlane.f32.xlu0 %v433
    %v439 = vpop.xlane.xlu0 %438
    %v440 = vsub.f32 %v430, %v437
    %v441 = vsub.f32 %v433, %v439
    %v442 = vmul.f32 %v440, 1.442695
    %v443 = vpow.pop %v442
    %v444 = vmul.f32 %v441, 1.442695
    %v445 = vpow.pop %v444
    %446 = vmatprep.subr.mxu0 0.0
    %447 = vmatpush1.msra.mxu0 %v77
    %448 = vmatprep.subr.mxu0 0.0
    %449 = vmatpush1.msra.mxu0 %v78
    %450 = vmatprep.subr.mxu0 0.0
    %451 = vmatpush1.msra.mxu0 %v79
    %452 = vmatprep.subr.mxu0 0.0
    %453 = vmatpush1.msra.mxu0 %v80
    %454 = vmatprep.subr.mxu0 0.0
    %455 = vmatpush1.msra.mxu0 %v81
    %456 = vmatprep.subr.mxu0 0.0
    %457 = vmatpush1.msra.mxu0 %v82
    %458 = vmatprep.subr.mxu0 0.0
    %459 = vmatpush1.msra.mxu0 %v83
    %460 = vmatprep.subr.mxu0 0.0
    %461 = vmatpush1.msra.mxu0 %v84
    %462 = vmatprep.subr.mxu0 0.0
    %463 = vmatpush1.msra.mxu0 %v85
    %464 = vmatprep.subr.mxu0 0.0
    %465 = vmatpush1.msra.mxu0 %v86
    %466 = vmatprep.subr.mxu0 0.0
    %467 = vmatpush1.msra.mxu0 %v87
    %468 = vmatprep.subr.mxu0 0.0
    %469 = vmatpush1.msra.mxu0 %v88
    %470 = vmatprep.subr.mxu0 0.0
    %471 = vmatpush1.msra.mxu0 %v89
    %472 = vmatprep.subr.mxu0 0.0
    %473 = vmatpush1.msra.mxu0 %v90
    %474 = vmatprep.subr.mxu0 0.0
    %475 = vmatpush1.msra.mxu0 %v91
    %476 = vmatprep.subr.mxu0 0.0
    %477 = vmatpush1.msra.mxu0 %v92
    %478 = vmatprep.subr.mxu0 0.0
    %479 = vmatpush1.msra.mxu0 0.0
    %480 = vmatprep.subr.mxu0 0.0
    %481 = vmatpush1.msra.mxu0 0.0
    %482 = vmatprep.subr.mxu0 0.0
    %483 = vmatpush1.msra.mxu0 0.0
    %484 = vmatprep.subr.mxu0 0.0
    %485 = vmatpush1.msra.mxu0 0.0
    %486 = vmatprep.subr.mxu0 0.0
    %487 = vmatpush1.msra.mxu0 0.0
    %488 = vmatprep.subr.mxu0 0.0
    %489 = vmatpush1.msra.mxu0 0.0
    %490 = vmatprep.subr.mxu0 0.0
    %491 = vmatpush1.msra.mxu0 0.0
    %492 = vmatprep.subr.mxu0 0.0
    %493 = vmatpush1.msra.mxu0 0.0
    %494 = vmatprep.subr.mxu0 0.0
    %495 = vmatpush1.msra.mxu0 0.0
    %496 = vmatprep.subr.mxu0 0.0
    %497 = vmatpush1.msra.mxu0 0.0
    %498 = vmatprep.subr.mxu0 0.0
    %499 = vmatpush1.msra.mxu0 0.0
    %500 = vmatprep.subr.mxu0 0.0
    %501 = vmatpush1.msra.mxu0 0.0
    %502 = vmatprep.subr.mxu0 0.0
    %503 = vmatpush1.msra.mxu0 0.0
    %504 = vmatprep.subr.mxu0 0.0
    %505 = vmatpush1.msra.mxu0 0.0
    %506 = vmatprep.subr.mxu0 0.0
    %507 = vmatpush1.msra.mxu0 0.0
    %508 = vmatprep.subr.mxu0 0.0
    %509 = vmatpush1.msra.mxu0 0.0
    %510 = vmatprep.mubr.f32.mxu0 0.0
    %511 = vmatmul.mubr.f32.gmra.mrb[0].mxu0 %v443
    %v512 = vpop.f32.mrb[0].mxu0
    %v513 = vadd.f32 0.0, %v512
    %v514 = vpop.f32.mrb[0].mxu0
    %515 = vmatprep.mubr.f32.mxu0 0.0
    %516 = vmatmul.mubr.f32.gmra.mrb[0].mxu0 %v445
    %v517 = vpop.f32.mrb[0].mxu0
    %v518 = vadd.f32 0.0, %v517
    %v519 = vpop.f32.mrb[0].mxu0
    %520 = vdwg.mxu0
    %v521 = vrcp.pop %v513
    %v522 = vrcp.pop %v518
    %v523 = vmul.f32 %v75, %v521
    %v524 = vmul.f32 %v76, %v522
    %v525 = vmul.f32 %v443, %v523
    %v526 = vmul.f32 %v445, %v524
    %v527 = vpack.c.bf16 %v526, %v525
    %528 = vmatprep.subr.bf16.mxu0 0
    %529 = vmatpush1.bf16.msra.mxu0 %v359
    %530 = vmatprep.subr.bf16.mxu0 0
    %531 = vmatpush1.bf16.msra.mxu0 %v360
    %532 = vmatprep.subr.bf16.mxu0 0
    %533 = vmatpush1.bf16.msra.mxu0 %v361
    %534 = vmatprep.subr.bf16.mxu0 0
    %535 = vmatpush1.bf16.msra.mxu0 %v362
    %536 = vmatprep.subr.bf16.mxu0 0
    %537 = vmatpush1.bf16.msra.mxu0 %v363
    %538 = vmatprep.subr.bf16.mxu0 0
    %539 = vmatpush1.bf16.msra.mxu0 %v364
    %540 = vmatprep.subr.bf16.mxu0 0
    %541 = vmatpush1.bf16.msra.mxu0 %v365
    %542 = vmatprep.subr.bf16.mxu0 0
    %543 = vmatpush1.bf16.msra.mxu0 %v366
    %544 = vmatprep.subr.bf16.mxu0 0
    %545 = vmatpush1.bf16.msra.mxu0 0
    %546 = vmatprep.subr.bf16.mxu0 0
    %547 = vmatpush1.bf16.msra.mxu0 0
    %548 = vmatprep.subr.bf16.mxu0 0
    %549 = vmatpush1.bf16.msra.mxu0 0
    %550 = vmatprep.subr.bf16.mxu0 0
    %551 = vmatpush1.bf16.msra.mxu0 0
    %552 = vmatprep.subr.bf16.mxu0 0
    %553 = vmatpush1.bf16.msra.mxu0 0
    %554 = vmatprep.subr.bf16.mxu0 0
    %555 = vmatpush1.bf16.msra.mxu0 0
    %556 = vmatprep.subr.bf16.mxu0 0
    %557 = vmatpush1.bf16.msra.mxu0 0
    %558 = vmatprep.subr.bf16.mxu0 0
    %559 = vmatpush1.bf16.msra.mxu0 0
    %560 = vmatprep.mubr.bf16.mxu0 0
    %561 = vmatmul.mubr.bf16.gmra.mrb[0].mxu0 %v527
    %v562 = vpop.f32.mrb[0].mxu0
    %v563 = vadd.f32 0.0, %v562
    %v564 = vpop.f32.mrb[0].mxu0
    %v565 = vpop.f32.mrb[0].mxu0
    %v566 = vadd.f32 0.0, %v565
    %v567 = vpop.f32.mrb[0].mxu0
    %568 = vdwg.mxu0
    %v569 = vpack.c.bf16 %v566, %v563
    %v570 = vlaneseq
    %v571 = vshrl.u32 %v570, 7
    %v572 = vsub.s32 0, %v571
    %v573 = vrot.slane %v124, %v572
    %v578 = vunpack.c.l.b16 %v105
    %v579 = vunpack.c.l.b16 %v106
    %v580 = vunpack.c.l.b16 %v107
    %v581 = vunpack.c.l.b16 %v108
    %v582 = vpack.c.b16 %v579, %v578
    %v583 = vpack.c.b16 %v581, %v580
    %v585 = vsel %vm146, %v569, 0
    %v588 = vsel %vm146, %v582, 0
    %v591 = vsel %vm146, %v583, 0
    %593 = vmatprep.subr.bf16.mxu0 0
    %594 = vmatpush1.bf16.xpose.msra.mxu0 %v588
    %595 = vmatprep.subr.bf16.mxu0 0
    %596 = vmatpush1.bf16.xpose.msra.mxu0 %v591
    %597 = vmatprep.subr.bf16.mxu0 0
    %598 = vmatpush1.bf16.xpose.msra.mxu0 0
    %599 = vmatprep.subr.bf16.mxu0 0
    %600 = vmatpush1.bf16.xpose.msra.mxu0 0
    %601 = vmatprep.subr.bf16.mxu0 0
    %602 = vmatpush1.bf16.xpose.msra.mxu0 0
    %603 = vmatprep.subr.bf16.mxu0 0
    %604 = vmatpush1.bf16.xpose.msra.mxu0 0
    %605 = vmatprep.subr.bf16.mxu0 0
    %606 = vmatpush1.bf16.xpose.msra.mxu0 0
    %607 = vmatprep.subr.bf16.mxu0 0
    %608 = vmatpush1.bf16.xpose.msra.mxu0 0
    %609 = vmatprep.subr.bf16.mxu0 0
    %610 = vmatpush1.bf16.xpose.msra.mxu0 0
    %611 = vmatprep.subr.bf16.mxu0 0
    %612 = vmatpush1.bf16.xpose.msra.mxu0 0
    %613 = vmatprep.subr.bf16.mxu0 0
    %614 = vmatpush1.bf16.xpose.msra.mxu0 0
    %615 = vmatprep.subr.bf16.mxu0 0
    %616 = vmatpush1.bf16.xpose.msra.mxu0 0
    %617 = vmatprep.subr.bf16.mxu0 0
    %618 = vmatpush1.bf16.xpose.msra.mxu0 0
    %619 = vmatprep.subr.bf16.mxu0 0
    %620 = vmatpush1.bf16.xpose.msra.mxu0 0
    %621 = vmatprep.subr.bf16.mxu0 0
    %622 = vmatpush1.bf16.xpose.msra.mxu0 0
    %623 = vmatprep.subr.bf16.mxu0 0
    %624 = vmatpush1.bf16.xpose.msra.mxu0 0
    %625 = vmatprep.mubr.bf16.mxu0 0
    %626 = vmatmul.mubr.bf16.gmra.mrb[0].mxu0 %v585
    %v627 = vpop.f32.mrb[0].mxu0
    %v628 = vadd.f32 %v573, %v627
    %v629 = vpop.f32.mrb[0].mxu0
    %v630 = vpop.f32.mrb[0].mxu0
    %v631 = vadd.f32 %v573, %v630
    %v632 = vpop.f32.mrb[0].mxu0
    %633 = vdwg.mxu0
    %v634 = vadd.f32 %v57, %v628
    %v635 = vadd.f32 %v58, %v631
    %v636 = vsel %vm146, %v634, 0.0
    %637 = vadd.xlane.f32.xlu0 %v636
    %v638 = vpop.xlane.xlu0 %637
    %v639 = vsel %vm146, %v635, 0.0
    %640 = vadd.xlane.f32.xlu0 %v639
    %v641 = vpop.xlane.xlu0 %640
    %v642 = vrcp.pop 32.0
    %v643 = vmul.f32 %v638, %v642
    %v644 = vmul.f32 %v641, %v642
    %v645 = vsub.f32 %v634, %v643
    %v646 = vsub.f32 %v635, %v644
    %v647 = vmul.f32 %v645, %v645
    %v648 = vmul.f32 %v646, %v646
    %v649 = vsel %vm146, %v647, 0.0
    %650 = vadd.xlane.f32.xlu0 %v649
    %v651 = vpop.xlane.xlu0 %650
    %v652 = vsel %vm146, %v648, 0.0
    %653 = vadd.xlane.f32.xlu0 %v652
    %v654 = vpop.xlane.xlu0 %653
    %v655 = vmul.f32 %v651, %v642
    %v656 = vmul.f32 %v654, %v642
    %v657 = vadd.f32 %v655, 1e-05
    %v658 = vadd.f32 %v656, 1e-05
    %v659 = vrsqrt.pop %v657
    %v660 = vrsqrt.pop %v658
    %v661 = vmul.f32 %v645, %v659
    %v662 = vmul.f32 %v646, %v660
    %v663 = vlaneseq
    %v664 = vshrl.u32 %v663, 7
    %v665 = vsub.s32 0, %v664
    %v666 = vrot.slane %v127, %v665
    %v667 = vmul.f32 %v661, %v666
    %v668 = vmul.f32 %v662, %v666
    %v669 = vlaneseq
    %v670 = vshrl.u32 %v669, 7
    %v671 = vsub.s32 0, %v670
    %v672 = vrot.slane %v128, %v671
    %v673 = vadd.f32 %v667, %v672
    %v674 = vadd.f32 %v668, %v672
    %v675 = vpack.c.bf16 %v674, %v673
    %v676 = vlaneseq
    %v677 = vshrl.u32 %v676, 7
    %v678 = vsub.s32 0, %v677
    %v679 = vrot.slane %v125, %v678
    %v688 = vunpack.c.l.b16 %v109
    %v689 = vunpack.c.l.b16 %v110
    %v690 = vunpack.c.l.b16 %v111
    %v691 = vunpack.c.l.b16 %v112
    %v692 = vunpack.c.l.b16 %v113
    %v693 = vunpack.c.l.b16 %v114
    %v694 = vunpack.c.l.b16 %v115
    %v695 = vunpack.c.l.b16 %v116
    %v696 = vpack.c.b16 %v689, %v688
    %v697 = vpack.c.b16 %v691, %v690
    %v698 = vpack.c.b16 %v693, %v692
    %v699 = vpack.c.b16 %v695, %v694
    %v701 = vsel %vm146, %v675, 0
    %v704 = vsel %vm146, %v696, 0
    %v707 = vsel %vm146, %v697, 0
    %v710 = vsel %vm146, %v698, 0
    %v713 = vsel %vm146, %v699, 0
    %715 = vmatprep.subr.bf16.mxu0 0
    %716 = vmatpush1.bf16.xpose.msra.mxu0 %v704
    %717 = vmatprep.subr.bf16.mxu0 0
    %718 = vmatpush1.bf16.xpose.msra.mxu0 %v707
    %719 = vmatprep.subr.bf16.mxu0 0
    %720 = vmatpush1.bf16.xpose.msra.mxu0 %v710
    %721 = vmatprep.subr.bf16.mxu0 0
    %722 = vmatpush1.bf16.xpose.msra.mxu0 %v713
    %723 = vmatprep.subr.bf16.mxu0 0
    %724 = vmatpush1.bf16.xpose.msra.mxu0 0
    %725 = vmatprep.subr.bf16.mxu0 0
    %726 = vmatpush1.bf16.xpose.msra.mxu0 0
    %727 = vmatprep.subr.bf16.mxu0 0
    %728 = vmatpush1.bf16.xpose.msra.mxu0 0
    %729 = vmatprep.subr.bf16.mxu0 0
    %730 = vmatpush1.bf16.xpose.msra.mxu0 0
    %731 = vmatprep.subr.bf16.mxu0 0
    %732 = vmatpush1.bf16.xpose.msra.mxu0 0
    %733 = vmatprep.subr.bf16.mxu0 0
    %734 = vmatpush1.bf16.xpose.msra.mxu0 0
    %735 = vmatprep.subr.bf16.mxu0 0
    %736 = vmatpush1.bf16.xpose.msra.mxu0 0
    %737 = vmatprep.subr.bf16.mxu0 0
    %738 = vmatpush1.bf16.xpose.msra.mxu0 0
    %739 = vmatprep.subr.bf16.mxu0 0
    %740 = vmatpush1.bf16.xpose.msra.mxu0 0
    %741 = vmatprep.subr.bf16.mxu0 0
    %742 = vmatpush1.bf16.xpose.msra.mxu0 0
    %743 = vmatprep.subr.bf16.mxu0 0
    %744 = vmatpush1.bf16.xpose.msra.mxu0 0
    %745 = vmatprep.subr.bf16.mxu0 0
    %746 = vmatpush1.bf16.xpose.msra.mxu0 0
    %747 = vmatprep.mubr.bf16.mxu0 0
    %748 = vmatmul.mubr.bf16.gmra.mrb[0].mxu0 %v701
    %v749 = vpop.f32.mrb[0].mxu0
    %v750 = vadd.f32 %v679, %v749
    %v751 = vpop.f32.mrb[0].mxu0
    %v752 = vpop.f32.mrb[0].mxu0
    %v753 = vadd.f32 %v679, %v752
    %v754 = vpop.f32.mrb[0].mxu0
    %755 = vdwg.mxu0
    %v756 = vmax.f32 %v750, 0.0
    %v757 = vmax.f32 %v753, 0.0
    %v758 = vpack.c.bf16 %v757, %v756
    %v763 = vunpack.c.l.b16 %v117
    %v764 = vunpack.c.l.b16 %v118
    %v765 = vunpack.c.l.b16 %v119
    %v766 = vunpack.c.l.b16 %v120
    %v767 = vpack.c.b16 %v764, %v763
    %v768 = vpack.c.b16 %v766, %v765
    %vm769 = vcmask 523264
    %v771 = vsel %vm769, %v758, 0
    %v774 = vsel %vm769, %v767, 0
    %v777 = vsel %vm769, %v768, 0
    %779 = vmatprep.subr.bf16.mxu0 0
    %780 = vmatpush1.bf16.xpose.msra.mxu0 %v774
    %781 = vmatprep.subr.bf16.mxu0 0
    %782 = vmatpush1.bf16.xpose.msra.mxu0 %v777
    %783 = vmatprep.subr.bf16.mxu0 0
    %784 = vmatpush1.bf16.xpose.msra.mxu0 0
    %785 = vmatprep.subr.bf16.mxu0 0
    %786 = vmatpush1.bf16.xpose.msra.mxu0 0
    %787 = vmatprep.subr.bf16.mxu0 0
    %788 = vmatpush1.bf16.xpose.msra.mxu0 0
    %789 = vmatprep.subr.bf16.mxu0 0
    %790 = vmatpush1.bf16.xpose.msra.mxu0 0
    %791 = vmatprep.subr.bf16.mxu0 0
    %792 = vmatpush1.bf16.xpose.msra.mxu0 0
    %793 = vmatprep.subr.bf16.mxu0 0
    %794 = vmatpush1.bf16.xpose.msra.mxu0 0
    %795 = vmatprep.subr.bf16.mxu0 0
    %796 = vmatpush1.bf16.xpose.msra.mxu0 0
    %797 = vmatprep.subr.bf16.mxu0 0
    %798 = vmatpush1.bf16.xpose.msra.mxu0 0
    %799 = vmatprep.subr.bf16.mxu0 0
    %800 = vmatpush1.bf16.xpose.msra.mxu0 0
    %801 = vmatprep.subr.bf16.mxu0 0
    %802 = vmatpush1.bf16.xpose.msra.mxu0 0
    %803 = vmatprep.subr.bf16.mxu0 0
    %804 = vmatpush1.bf16.xpose.msra.mxu0 0
    %805 = vmatprep.subr.bf16.mxu0 0
    %806 = vmatpush1.bf16.xpose.msra.mxu0 0
    %807 = vmatprep.subr.bf16.mxu0 0
    %808 = vmatpush1.bf16.xpose.msra.mxu0 0
    %809 = vmatprep.subr.bf16.mxu0 0
    %810 = vmatpush1.bf16.xpose.msra.mxu0 0
    %811 = vmatprep.mubr.bf16.mxu0 0
    %812 = vmatmul.mubr.bf16.gmra.mrb[0].mxu0 %v771
    %v813 = vpop.f32.mrb[0].mxu0
    %v814 = vadd.f32 0.0, %v813
    %v815 = vpop.f32.mrb[0].mxu0
    %v816 = vpop.f32.mrb[0].mxu0
    %v817 = vadd.f32 0.0, %v816
    %v818 = vpop.f32.mrb[0].mxu0
    %819 = vdwg.mxu0
    %v820 = vadd.f32 %v673, %v814
    %v821 = vadd.f32 %v674, %v817
    %v822 = vlaneseq
    %v823 = vshrl.u32 %v822, 7
    %v824 = vsub.s32 0, %v823
    %v825 = vrot.slane %v126, %v824
    %v826 = vadd.f32 %v820, %v825
    %v827 = vadd.f32 %v821, %v825
    %v828 = vsel %vm146, %v826, 0.0
    %829 = vadd.xlane.f32.xlu0 %v828
    %v830 = vpop.xlane.xlu0 %829
    %v831 = vsel %vm146, %v827, 0.0
    %832 = vadd.xlane.f32.xlu0 %v831
    %v833 = vpop.xlane.xlu0 %832
    %v834 = vmul.f32 %v830, %v642
    %v835 = vmul.f32 %v833, %v642
    %v836 = vsub.f32 %v826, %v834
    %v837 = vsub.f32 %v827, %v835
    %v838 = vmul.f32 %v836, %v836
    %v839 = vmul.f32 %v837, %v837
    %v840 = vsel %vm146, %v838, 0.0
    %841 = vadd.xlane.f32.xlu0 %v840
    %v842 = vpop.xlane.xlu0 %841
    %v843 = vsel %vm146, %v839, 0.0
    %844 = vadd.xlane.f32.xlu0 %v843
    %v845 = vpop.xlane.xlu0 %844
    %v846 = vmul.f32 %v842, %v642
    %v847 = vmul.f32 %v845, %v642
    %v848 = vadd.f32 %v846, 1e-05
    %v849 = vadd.f32 %v847, 1e-05
    %v850 = vrsqrt.pop %v848
    %v851 = vrsqrt.pop %v849
    %v852 = vmul.f32 %v836, %v850
    %v853 = vmul.f32 %v837, %v851
    %v854 = vlaneseq
    %v855 = vshrl.u32 %v854, 7
    %v856 = vsub.s32 0, %v855
    %v857 = vrot.slane %v129, %v856
    %v858 = vmul.f32 %v852, %v857
    %v859 = vmul.f32 %v853, %v857
    %v860 = vlaneseq
    %v861 = vshrl.u32 %v860, 7
    %v862 = vsub.s32 0, %v861
    %v863 = vrot.slane %v130, %v862
    %v864 = vadd.f32 %v858, %v863
    %v865 = vadd.f32 %v859, %v863
    %v866 = vld [vmem:[#allocation5 + $0x70] sm:$0xf]
    %v867 = vld [vmem:[#allocation5 + $0x74] sm:$0xf]
    %v868 = vld [vmem:[#allocation5 + $0x78] sm:$0xf]
    %v869 = vld [vmem:[#allocation5 + $0x7c] sm:$0xf]
    %v870 = vld [vmem:[#allocation5 + $0x80] sm:$0xf]
    %v871 = vld [vmem:[#allocation5 + $0x84] sm:$0xf]
    %v872 = vld [vmem:[#allocation5 + $0x88] sm:$0xf]
    %v873 = vld [vmem:[#allocation5 + $0x8c] sm:$0xf]
    %v874 = vld [vmem:[#allocation5 + $0x90] sm:$0xf]
    %v875 = vld [vmem:[#allocation5 + $0x94] sm:$0xf]
    %v876 = vld [vmem:[#allocation5 + $0x98] sm:$0xf]
    %v877 = vld [vmem:[#allocation5 + $0x9c] sm:$0xf]
    %v878 = vld [vmem:[#allocation5 + $0xa0] sm:$0xf]
    %v879 = vld [vmem:[#allocation5 + $0xa4] sm:$0xf]
    %v880 = vld [vmem:[#allocation5 + $0xa8] sm:$0xf]
    %v881 = vld [vmem:[#allocation5 + $0xac] sm:$0xf]
    %v882 = vld [vmem:[#allocation5 + $0xb0] sm:$0xf]
    %v883 = vld [vmem:[#allocation5 + $0xb4] sm:$0xf]
    %v884 = vld [vmem:[#allocation5 + $0xb8] sm:$0xf]
    %v885 = vld [vmem:[#allocation5 + $0xbc] sm:$0xf]
    %v886 = vld [vmem:[#allocation5 + $0xc0] sm:$0xf]
    %v887 = vld [vmem:[#allocation5 + $0xc4] sm:$0xf]
    %v888 = vld [vmem:[#allocation5 + $0xc8] sm:$0xf]
    %v889 = vld [vmem:[#allocation5 + $0xcc] sm:$0xf]
    %v890 = vld [vmem:[#allocation5 + $0xd0] sm:$0xf]
    %v891 = vld [vmem:[#allocation5 + $0xd4] sm:$0xf]
    %v892 = vld [vmem:[#allocation5 + $0xd8] sm:$0xf]
    %v893 = vld [vmem:[#allocation5 + $0xdc] sm:$0xf]
    %v894 = vld [vmem:[#allocation7 + $0xa] sm:$0x1]
    %v895 = vld [vmem:[#allocation7 + $0xb] sm:$0x1]
    %v896 = vld [vmem:[#allocation7 + $0xc] sm:$0x1]
    %v897 = vld [vmem:[#allocation7 + $0xd] sm:$0x1]
    %v898 = vld [vmem:[#allocation7 + $0xe] sm:$0x1]
    %v899 = vld [vmem:[#allocation7 + $0xf] sm:$0x1]
    %v900 = vld [vmem:[#allocation7 + $0x10] sm:$0x1]
    %v901 = vld [vmem:[#allocation7 + $0x11] sm:$0x1]
    %v902 = vld [vmem:[#allocation7 + $0x12] sm:$0x1]
    %v903 = vld [vmem:[#allocation7 + $0x13] sm:$0x1]
    %v904 = vpack.c.bf16 %v865, %v864
    %v905 = vlaneseq
    %v906 = vshrl.u32 %v905, 7
    %v907 = vsub.s32 0, %v906
    %v908 = vrot.slane %v894, %v907
    %v913 = vunpack.c.l.b16 %v866
    %v914 = vunpack.c.l.b16 %v867
    %v915 = vunpack.c.l.b16 %v868
    %v916 = vunpack.c.l.b16 %v869
    %v917 = vpack.c.b16 %v914, %v913
    %v918 = vpack.c.b16 %v916, %v915
    %v920 = vsel %vm146, %v904, 0
    %v923 = vsel %vm146, %v917, 0
    %v926 = vsel %vm146, %v918, 0
    %928 = vmatprep.subr.bf16.mxu0 0
    %929 = vmatpush1.bf16.xpose.msra.mxu0 %v923
    %930 = vmatprep.subr.bf16.mxu0 0
    %931 = vmatpush1.bf16.xpose.msra.mxu0 %v926
    %932 = vmatprep.subr.bf16.mxu0 0
    %933 = vmatpush1.bf16.xpose.msra.mxu0 0
    %934 = vmatprep.subr.bf16.mxu0 0
    %935 = vmatpush1.bf16.xpose.msra.mxu0 0
    %936 = vmatprep.subr.bf16.mxu0 0
    %937 = vmatpush1.bf16.xpose.msra.mxu0 0
    %938 = vmatprep.subr.bf16.mxu0 0
    %939 = vmatpush1.bf16.xpose.msra.mxu0 0
    %940 = vmatprep.subr.bf16.mxu0 0
    %941 = vmatpush1.bf16.xpose.msra.mxu0 0
    %942 = vmatprep.subr.bf16.mxu0 0
    %943 = vmatpush1.bf16.xpose.msra.mxu0 0
    %944 = vmatprep.subr.bf16.mxu0 0
    %945 = vmatpush1.bf16.xpose.msra.mxu0 0
    %946 = vmatprep.subr.bf16.mxu0 0
    %947 = vmatpush1.bf16.xpose.msra.mxu0 0
    %948 = vmatprep.subr.bf16.mxu0 0
    %949 = vmatpush1.bf16.xpose.msra.mxu0 0
    %950 = vmatprep.subr.bf16.mxu0 0
    %951 = vmatpush1.bf16.xpose.msra.mxu0 0
    %952 = vmatprep.subr.bf16.mxu0 0
    %953 = vmatpush1.bf16.xpose.msra.mxu0 0
    %954 = vmatprep.subr.bf16.mxu0 0
    %955 = vmatpush1.bf16.xpose.msra.mxu0 0
    %956 = vmatprep.subr.bf16.mxu0 0
    %957 = vmatpush1.bf16.xpose.msra.mxu0 0
    %958 = vmatprep.subr.bf16.mxu0 0
    %959 = vmatpush1.bf16.xpose.msra.mxu0 0
    %960 = vmatprep.mubr.bf16.mxu0 0
    %961 = vmatmul.mubr.bf16.gmra.mrb[0].mxu0 %v920
    %v962 = vpop.f32.mrb[0].mxu0
    %v963 = vadd.f32 %v908, %v962
    %v964 = vpop.f32.mrb[0].mxu0
    %v965 = vpop.f32.mrb[0].mxu0
    %v966 = vadd.f32 %v908, %v965
    %v967 = vpop.f32.mrb[0].mxu0
    %968 = vdwg.mxu0
    %v969 = vlaneseq
    %v970 = vshrl.u32 %v969, 7
    %v971 = vsub.s32 0, %v970
    %v972 = vrot.slane %v895, %v971
    %v977 = vunpack.c.l.b16 %v870
    %v978 = vunpack.c.l.b16 %v871
    %v979 = vunpack.c.l.b16 %v872
    %v980 = vunpack.c.l.b16 %v873
    %v981 = vpack.c.b16 %v978, %v977
    %v982 = vpack.c.b16 %v980, %v979
    %v984 = vsel %vm146, %v981, 0
    %v987 = vsel %vm146, %v982, 0
    %989 = vmatprep.subr.bf16.mxu0 0
    %990 = vmatpush1.bf16.xpose.msra.mxu0 %v984
    %991 = vmatprep.subr.bf16.mxu0 0
    %992 = vmatpush1.bf16.xpose.msra.mxu0 %v987
    %993 = vmatprep.subr.bf16.mxu0 0
    %994 = vmatpush1.bf16.xpose.msra.mxu0 0
    %995 = vmatprep.subr.bf16.mxu0 0
    %996 = vmatpush1.bf16.xpose.msra.mxu0 0
    %997 = vmatprep.subr.bf16.mxu0 0
    %998 = vmatpush1.bf16.xpose.msra.mxu0 0
    %999 = vmatprep.subr.bf16.mxu0 0
    %1000 = vmatpush1.bf16.xpose.msra.mxu0 0
    %1001 = vmatprep.subr.bf16.mxu0 0
    %1002 = vmatpush1.bf16.xpose.msra.mxu0 0
    %1003 = vmatprep.subr.bf16.mxu0 0
    %1004 = vmatpush1.bf16.xpose.msra.mxu0 0
    %1005 = vmatprep.subr.bf16.mxu0 0
    %1006 = vmatpush1.bf16.xpose.msra.mxu0 0
    %1007 = vmatprep.subr.bf16.mxu0 0
    %1008 = vmatpush1.bf16.xpose.msra.mxu0 0
    %1009 = vmatprep.subr.bf16.mxu0 0
    %1010 = vmatpush1.bf16.xpose.msra.mxu0 0
    %1011 = vmatprep.subr.bf16.mxu0 0
    %1012 = vmatpush1.bf16.xpose.msra.mxu0 0
    %1013 = vmatprep.subr.bf16.mxu0 0
    %1014 = vmatpush1.bf16.xpose.msra.mxu0 0
    %1015 = vmatprep.subr.bf16.mxu0 0
    %1016 = vmatpush1.bf16.xpose.msra.mxu0 0
    %1017 = vmatprep.subr.bf16.mxu0 0
    %1018 = vmatpush1.bf16.xpose.msra.mxu0 0
    %1019 = vmatprep.subr.bf16.mxu0 0
    %1020 = vmatpush1.bf16.xpose.msra.mxu0 0
    %1021 = vmatprep.mubr.bf16.mxu0 0
    %1022 = vmatmul.mubr.bf16.gmra.mrb[0].mxu0 %v920
    %v1023 = vpop.f32.mrb[0].mxu0
    %v1024 = vadd.f32 %v972, %v1023
    %v1025 = vpop.f32.mrb[0].mxu0
    %v1026 = vpop.f32.mrb[0].mxu0
    %v1027 = vadd.f32 %v972, %v1026
    %v1028 = vpop.f32.mrb[0].mxu0
    %1029 = vdwg.mxu0
    %v1030 = vlaneseq
    %v1031 = vshrl.u32 %v1030, 7
    %v1032 = vsub.s32 0, %v1031
    %v1033 = vrot.slane %v896, %v1032
    %v1038 = vunpack.c.l.b16 %v874
    %v1039 = vunpack.c.l.b16 %v875
    %v1040 = vunpack.c.l.b16 %v876
    %v1041 = vunpack.c.l.b16 %v877
    %v1042 = vpack.c.b16 %v1039, %v1038
    %v1043 = vpack.c.b16 %v1041, %v1040
    %v1045 = vsel %vm146, %v1042, 0
    %v1048 = vsel %vm146, %v1043, 0
    %1050 = vmatprep.subr.bf16.mxu0 0
    %1051 = vmatpush1.bf16.xpose.msra.mxu0 %v1045
    %1052 = vmatprep.subr.bf16.mxu0 0
    %1053 = vmatpush1.bf16.xpose.msra.mxu0 %v1048
    %1054 = vmatprep.subr.bf16.mxu0 0
    %1055 = vmatpush1.bf16.xpose.msra.mxu0 0
    %1056 = vmatprep.subr.bf16.mxu0 0
    %1057 = vmatpush1.bf16.xpose.msra.mxu0 0
    %1058 = vmatprep.subr.bf16.mxu0 0
    %1059 = vmatpush1.bf16.xpose.msra.mxu0 0
    %1060 = vmatprep.subr.bf16.mxu0 0
    %1061 = vmatpush1.bf16.xpose.msra.mxu0 0
    %1062 = vmatprep.subr.bf16.mxu0 0
    %1063 = vmatpush1.bf16.xpose.msra.mxu0 0
    %1064 = vmatprep.subr.bf16.mxu0 0
    %1065 = vmatpush1.bf16.xpose.msra.mxu0 0
    %1066 = vmatprep.subr.bf16.mxu0 0
    %1067 = vmatpush1.bf16.xpose.msra.mxu0 0
    %1068 = vmatprep.subr.bf16.mxu0 0
    %1069 = vmatpush1.bf16.xpose.msra.mxu0 0
    %1070 = vmatprep.subr.bf16.mxu0 0
    %1071 = vmatpush1.bf16.xpose.msra.mxu0 0
    %1072 = vmatprep.subr.bf16.mxu0 0
    %1073 = vmatpush1.bf16.xpose.msra.mxu0 0
    %1074 = vmatprep.subr.bf16.mxu0 0
    %1075 = vmatpush1.bf16.xpose.msra.mxu0 0
    %1076 = vmatprep.subr.bf16.mxu0 0
    %1077 = vmatpush1.bf16.xpose.msra.mxu0 0
    %1078 = vmatprep.subr.bf16.mxu0 0
    %1079 = vmatpush1.bf16.xpose.msra.mxu0 0
    %1080 = vmatprep.subr.bf16.mxu0 0
    %1081 = vmatpush1.bf16.xpose.msra.mxu0 0
    %1082 = vmatprep.mubr.bf16.mxu0 0
    %1083 = vmatmul.mubr.bf16.gmra.mrb[0].mxu0 %v920
    %v1084 = vpop.f32.mrb[0].mxu0
    %v1085 = vadd.f32 %v1033, %v1084
    %v1086 = vpop.f32.mrb[0].mxu0
    %v1087 = vpop.f32.mrb[0].mxu0
    %v1088 = vadd.f32 %v1033, %v1087
    %v1089 = vpop.f32.mrb[0].mxu0
    %1090 = vdwg.mxu0
    %v1091 = vmul.f32 %v1024, %v59
    %v1092 = vmul.f32 %v1027, %v60
    %v1093 = vmul.f32 %v1024, %v61
    %v1094 = vmul.f32 %v1027, %v62
    %v1095 = vmul.f32 %v1024, %v63
    %v1096 = vmul.f32 %v1027, %v64
    %v1097 = vmul.f32 %v1024, %v65
    %v1098 = vmul.f32 %v1027, %v66
    %v1099 = vmul.f32 %v1024, %v67
    %v1100 = vmul.f32 %v1027, %v68
    %v1101 = vmul.f32 %v1024, %v69
    %v1102 = vmul.f32 %v1027, %v70
    %v1103 = vmul.f32 %v1024, %v71
    %v1104 = vmul.f32 %v1027, %v72
    %v1105 = vmul.f32 %v1024, %v73
    %v1106 = vmul.f32 %v1027, %v74
    %v1107 = vpack.c.bf16 %v1092, %v1091
    %v1108 = vpack.c.bf16 %v1094, %v1093
    %v1109 = vpack.c.bf16 %v1096, %v1095
    %v1110 = vpack.c.bf16 %v1098, %v1097
    %v1111 = vpack.c.bf16 %v1100, %v1099
    %v1112 = vpack.c.bf16 %v1102, %v1101
    %v1113 = vpack.c.bf16 %v1104, %v1103
    %v1114 = vpack.c.bf16 %v1106, %v1105
    %v1115 = vmul.f32 %v1085, %v59
    %v1116 = vmul.f32 %v1088, %v60
    %v1117 = vmul.f32 %v1085, %v61
    %v1118 = vmul.f32 %v1088, %v62
    %v1119 = vmul.f32 %v1085, %v63
    %v1120 = vmul.f32 %v1088, %v64
    %v1121 = vmul.f32 %v1085, %v65
    %v1122 = vmul.f32 %v1088, %v66
    %v1123 = vmul.f32 %v1085, %v67
    %v1124 = vmul.f32 %v1088, %v68
    %v1125 = vmul.f32 %v1085, %v69
    %v1126 = vmul.f32 %v1088, %v70
    %v1127 = vmul.f32 %v1085, %v71
    %v1128 = vmul.f32 %v1088, %v72
    %v1129 = vmul.f32 %v1085, %v73
    %v1130 = vmul.f32 %v1088, %v74
    %v1131 = vpack.c.bf16 %v1116, %v1115
    %v1132 = vpack.c.bf16 %v1118, %v1117
    %v1133 = vpack.c.bf16 %v1120, %v1119
    %v1134 = vpack.c.bf16 %v1122, %v1121
    %v1135 = vpack.c.bf16 %v1124, %v1123
    %v1136 = vpack.c.bf16 %v1126, %v1125
    %v1137 = vpack.c.bf16 %v1128, %v1127
    %v1138 = vpack.c.bf16 %v1130, %v1129
    %v1139 = vpack.c.bf16 %v966, %v963
    %v1141 = vsel %vm146, %v1139, 0
    %v1144 = vsel %vm146, %v1107, 0
    %v1147 = vsel %vm146, %v1108, 0
    %v1150 = vsel %vm146, %v1109, 0
    %v1153 = vsel %vm146, %v1110, 0
    %v1156 = vsel %vm146, %v1111, 0
    %v1159 = vsel %vm146, %v1112, 0
    %v1162 = vsel %vm146, %v1113, 0
    %v1165 = vsel %vm146, %v1114, 0
    %1167 = vmatprep.subr.bf16.mxu0 0
    %1168 = vmatpush1.bf16.xpose.msra.mxu0 %v1144
    %1169 = vmatprep.subr.bf16.mxu0 0
    %1170 = vmatpush1.bf16.xpose.msra.mxu0 %v1147
    %1171 = vmatprep.subr.bf16.mxu0 0
    %1172 = vmatpush1.bf16.xpose.msra.mxu0 %v1150
    %1173 = vmatprep.subr.bf16.mxu0 0
    %1174 = vmatpush1.bf16.xpose.msra.mxu0 %v1153
    %1175 = vmatprep.subr.bf16.mxu0 0
    %1176 = vmatpush1.bf16.xpose.msra.mxu0 %v1156
    %1177 = vmatprep.subr.bf16.mxu0 0
    %1178 = vmatpush1.bf16.xpose.msra.mxu0 %v1159
    %1179 = vmatprep.subr.bf16.mxu0 0
    %1180 = vmatpush1.bf16.xpose.msra.mxu0 %v1162
    %1181 = vmatprep.subr.bf16.mxu0 0
    %1182 = vmatpush1.bf16.xpose.msra.mxu0 %v1165
    %1183 = vmatprep.subr.bf16.mxu0 0
    %1184 = vmatpush1.bf16.xpose.msra.mxu0 0
    %1185 = vmatprep.subr.bf16.mxu0 0
    %1186 = vmatpush1.bf16.xpose.msra.mxu0 0
    %1187 = vmatprep.subr.bf16.mxu0 0
    %1188 = vmatpush1.bf16.xpose.msra.mxu0 0
    %1189 = vmatprep.subr.bf16.mxu0 0
    %1190 = vmatpush1.bf16.xpose.msra.mxu0 0
    %1191 = vmatprep.subr.bf16.mxu0 0
    %1192 = vmatpush1.bf16.xpose.msra.mxu0 0
    %1193 = vmatprep.subr.bf16.mxu0 0
    %1194 = vmatpush1.bf16.xpose.msra.mxu0 0
    %1195 = vmatprep.subr.bf16.mxu0 0
    %1196 = vmatpush1.bf16.xpose.msra.mxu0 0
    %1197 = vmatprep.subr.bf16.mxu0 0
    %1198 = vmatpush1.bf16.xpose.msra.mxu0 0
    %1199 = vmatprep.mubr.bf16.mxu0 0
    %1200 = vmatmul.mubr.bf16.gmra.mrb[0].mxu0 %v1141
    %v1201 = vpop.f32.mrb[0].mxu0
    %v1202 = vadd.f32 0.0, %v1201
    %v1203 = vpop.f32.mrb[0].mxu0
    %v1204 = vpop.f32.mrb[0].mxu0
    %v1205 = vadd.f32 0.0, %v1204
    %v1206 = vpop.f32.mrb[0].mxu0
    %1207 = vdwg.mxu0
    %1208 = vmax.xlane.f32.xlu0 %v1202
    %v1209 = vpop.xlane.xlu0 %1208
    %1210 = vmax.xlane.f32.xlu0 %v1205
    %v1211 = vpop.xlane.xlu0 %1210
    %v1212 = vsub.f32 %v1202, %v1209
    %v1213 = vsub.f32 %v1205, %v1211
    %v1214 = vmul.f32 %v1212, 1.442695
    %v1215 = vpow.pop %v1214
    %v1216 = vmul.f32 %v1213, 1.442695
    %v1217 = vpow.pop %v1216
    %1218 = vmatprep.subr.mxu0 0.0
    %1219 = vmatpush1.msra.mxu0 %v77
    %1220 = vmatprep.subr.mxu0 0.0
    %1221 = vmatpush1.msra.mxu0 %v78
    %1222 = vmatprep.subr.mxu0 0.0
    %1223 = vmatpush1.msra.mxu0 %v79
    %1224 = vmatprep.subr.mxu0 0.0
    %1225 = vmatpush1.msra.mxu0 %v80
    %1226 = vmatprep.subr.mxu0 0.0
    %1227 = vmatpush1.msra.mxu0 %v81
    %1228 = vmatprep.subr.mxu0 0.0
    %1229 = vmatpush1.msra.mxu0 %v82
    %1230 = vmatprep.subr.mxu0 0.0
    %1231 = vmatpush1.msra.mxu0 %v83
    %1232 = vmatprep.subr.mxu0 0.0
    %1233 = vmatpush1.msra.mxu0 %v84
    %1234 = vmatprep.subr.mxu0 0.0
    %1235 = vmatpush1.msra.mxu0 %v85
    %1236 = vmatprep.subr.mxu0 0.0
    %1237 = vmatpush1.msra.mxu0 %v86
    %1238 = vmatprep.subr.mxu0 0.0
    %1239 = vmatpush1.msra.mxu0 %v87
    %1240 = vmatprep.subr.mxu0 0.0
    %1241 = vmatpush1.msra.mxu0 %v88
    %1242 = vmatprep.subr.mxu0 0.0
    %1243 = vmatpush1.msra.mxu0 %v89
    %1244 = vmatprep.subr.mxu0 0.0
    %1245 = vmatpush1.msra.mxu0 %v90
    %1246 = vmatprep.subr.mxu0 0.0
    %1247 = vmatpush1.msra.mxu0 %v91
    %1248 = vmatprep.subr.mxu0 0.0
    %1249 = vmatpush1.msra.mxu0 %v92
    %1250 = vmatprep.subr.mxu0 0.0
    %1251 = vmatpush1.msra.mxu0 0.0
    %1252 = vmatprep.subr.mxu0 0.0
    %1253 = vmatpush1.msra.mxu0 0.0
    %1254 = vmatprep.subr.mxu0 0.0
    %1255 = vmatpush1.msra.mxu0 0.0
    %1256 = vmatprep.subr.mxu0 0.0
    %1257 = vmatpush1.msra.mxu0 0.0
    %1258 = vmatprep.subr.mxu0 0.0
    %1259 = vmatpush1.msra.mxu0 0.0
    %1260 = vmatprep.subr.mxu0 0.0
    %1261 = vmatpush1.msra.mxu0 0.0
    %1262 = vmatprep.subr.mxu0 0.0
    %1263 = vmatpush1.msra.mxu0 0.0
    %1264 = vmatprep.subr.mxu0 0.0
    %1265 = vmatpush1.msra.mxu0 0.0
    %1266 = vmatprep.subr.mxu0 0.0
    %1267 = vmatpush1.msra.mxu0 0.0
    %1268 = vmatprep.subr.mxu0 0.0
    %1269 = vmatpush1.msra.mxu0 0.0
    %1270 = vmatprep.subr.mxu0 0.0
    %1271 = vmatpush1.msra.mxu0 0.0
    %1272 = vmatprep.subr.mxu0 0.0
    %1273 = vmatpush1.msra.mxu0 0.0
    %1274 = vmatprep.subr.mxu0 0.0
    %1275 = vmatpush1.msra.mxu0 0.0
    %1276 = vmatprep.subr.mxu0 0.0
    %1277 = vmatpush1.msra.mxu0 0.0
    %1278 = vmatprep.subr.mxu0 0.0
    %1279 = vmatpush1.msra.mxu0 0.0
    %1280 = vmatprep.subr.mxu0 0.0
    %1281 = vmatpush1.msra.mxu0 0.0
    %1282 = vmatprep.mubr.f32.mxu0 0.0
    %1283 = vmatmul.mubr.f32.gmra.mrb[0].mxu0 %v1215
    %v1284 = vpop.f32.mrb[0].mxu0
    %v1285 = vadd.f32 0.0, %v1284
    %v1286 = vpop.f32.mrb[0].mxu0
    %1287 = vmatprep.mubr.f32.mxu0 0.0
    %1288 = vmatmul.mubr.f32.gmra.mrb[0].mxu0 %v1217
    %v1289 = vpop.f32.mrb[0].mxu0
    %v1290 = vadd.f32 0.0, %v1289
    %v1291 = vpop.f32.mrb[0].mxu0
    %1292 = vdwg.mxu0
    %v1293 = vrcp.pop %v1285
    %v1294 = vrcp.pop %v1290
    %v1295 = vmul.f32 %v75, %v1293
    %v1296 = vmul.f32 %v76, %v1294
    %v1297 = vmul.f32 %v1215, %v1295
    %v1298 = vmul.f32 %v1217, %v1296
    %v1299 = vpack.c.bf16 %v1298, %v1297
    %1300 = vmatprep.subr.bf16.mxu0 0
    %1301 = vmatpush1.bf16.msra.mxu0 %v1131
    %1302 = vmatprep.subr.bf16.mxu0 0
    %1303 = vmatpush1.bf16.msra.mxu0 %v1132
    %1304 = vmatprep.subr.bf16.mxu0 0
    %1305 = vmatpush1.bf16.msra.mxu0 %v1133
    %1306 = vmatprep.subr.bf16.mxu0 0
    %1307 = vmatpush1.bf16.msra.mxu0 %v1134
    %1308 = vmatprep.subr.bf16.mxu0 0
    %1309 = vmatpush1.bf16.msra.mxu0 %v1135
    %1310 = vmatprep.subr.bf16.mxu0 0
    %1311 = vmatpush1.bf16.msra.mxu0 %v1136
    %1312 = vmatprep.subr.bf16.mxu0 0
    %1313 = vmatpush1.bf16.msra.mxu0 %v1137
    %1314 = vmatprep.subr.bf16.mxu0 0
    %1315 = vmatpush1.bf16.msra.mxu0 %v1138
    %1316 = vmatprep.subr.bf16.mxu0 0
    %1317 = vmatpush1.bf16.msra.mxu0 0
    %1318 = vmatprep.subr.bf16.mxu0 0
    %1319 = vmatpush1.bf16.msra.mxu0 0
    %1320 = vmatprep.subr.bf16.mxu0 0
    %1321 = vmatpush1.bf16.msra.mxu0 0
    %1322 = vmatprep.subr.bf16.mxu0 0
    %1323 = vmatpush1.bf16.msra.mxu0 0
    %1324 = vmatprep.subr.bf16.mxu0 0
    %1325 = vmatpush1.bf16.msra.mxu0 0
    %1326 = vmatprep.subr.bf16.mxu0 0
    %1327 = vmatpush1.bf16.msra.mxu0 0
    %1328 = vmatprep.subr.bf16.mxu0 0
    %1329 = vmatpush1.bf16.msra.mxu0 0
    %1330 = vmatprep.subr.bf16.mxu0 0
    %1331 = vmatpush1.bf16.msra.mxu0 0
    %1332 = vmatprep.mubr.bf16.mxu0 0
    %1333 = vmatmul.mubr.bf16.gmra.mrb[0].mxu0 %v1299
    %v1334 = vpop.f32.mrb[0].mxu0
    %v1335 = vadd.f32 0.0, %v1334
    %v1336 = vpop.f32.mrb[0].mxu0
    %v1337 = vpop.f32.mrb[0].mxu0
    %v1338 = vadd.f32 0.0, %v1337
    %v1339 = vpop.f32.mrb[0].mxu0
    %1340 = vdwg.mxu0
    %v1341 = vpack.c.bf16 %v1338, %v1335
    %v1342 = vlaneseq
    %v1343 = vshrl.u32 %v1342, 7
    %v1344 = vsub.s32 0, %v1343
    %v1345 = vrot.slane %v897, %v1344
    %v1350 = vunpack.c.l.b16 %v878
    %v1351 = vunpack.c.l.b16 %v879
    %v1352 = vunpack.c.l.b16 %v880
    %v1353 = vunpack.c.l.b16 %v881
    %v1354 = vpack.c.b16 %v1351, %v1350
    %v1355 = vpack.c.b16 %v1353, %v1352
    %v1357 = vsel %vm146, %v1341, 0
    %v1360 = vsel %vm146, %v1354, 0
    %v1363 = vsel %vm146, %v1355, 0
    %1365 = vmatprep.subr.bf16.mxu0 0
    %1366 = vmatpush1.bf16.xpose.msra.mxu0 %v1360
    %1367 = vmatprep.subr.bf16.mxu0 0
    %1368 = vmatpush1.bf16.xpose.msra.mxu0 %v1363
    %1369 = vmatprep.subr.bf16.mxu0 0
    %1370 = vmatpush1.bf16.xpose.msra.mxu0 0
    %1371 = vmatprep.subr.bf16.mxu0 0
    %1372 = vmatpush1.bf16.xpose.msra.mxu0 0
    %1373 = vmatprep.subr.bf16.mxu0 0
    %1374 = vmatpush1.bf16.xpose.msra.mxu0 0
    %1375 = vmatprep.subr.bf16.mxu0 0
    %1376 = vmatpush1.bf16.xpose.msra.mxu0 0
    %1377 = vmatprep.subr.bf16.mxu0 0
    %1378 = vmatpush1.bf16.xpose.msra.mxu0 0
    %1379 = vmatprep.subr.bf16.mxu0 0
    %1380 = vmatpush1.bf16.xpose.msra.mxu0 0
    %1381 = vmatprep.subr.bf16.mxu0 0
    %1382 = vmatpush1.bf16.xpose.msra.mxu0 0
    %1383 = vmatprep.subr.bf16.mxu0 0
    %1384 = vmatpush1.bf16.xpose.msra.mxu0 0
    %1385 = vmatprep.subr.bf16.mxu0 0
    %1386 = vmatpush1.bf16.xpose.msra.mxu0 0
    %1387 = vmatprep.subr.bf16.mxu0 0
    %1388 = vmatpush1.bf16.xpose.msra.mxu0 0
    %1389 = vmatprep.subr.bf16.mxu0 0
    %1390 = vmatpush1.bf16.xpose.msra.mxu0 0
    %1391 = vmatprep.subr.bf16.mxu0 0
    %1392 = vmatpush1.bf16.xpose.msra.mxu0 0
    %1393 = vmatprep.subr.bf16.mxu0 0
    %1394 = vmatpush1.bf16.xpose.msra.mxu0 0
    %1395 = vmatprep.subr.bf16.mxu0 0
    %1396 = vmatpush1.bf16.xpose.msra.mxu0 0
    %1397 = vmatprep.mubr.bf16.mxu0 0
    %1398 = vmatmul.mubr.bf16.gmra.mrb[0].mxu0 %v1357
    %v1399 = vpop.f32.mrb[0].mxu0
    %v1400 = vadd.f32 %v1345, %v1399
    %v1401 = vpop.f32.mrb[0].mxu0
    %v1402 = vpop.f32.mrb[0].mxu0
    %v1403 = vadd.f32 %v1345, %v1402
    %v1404 = vpop.f32.mrb[0].mxu0
    %1405 = vdwg.mxu0
    %v1406 = vadd.f32 %v864, %v1400
    %v1407 = vadd.f32 %v865, %v1403
    %v1408 = vsel %vm146, %v1406, 0.0
    %1409 = vadd.xlane.f32.xlu0 %v1408
    %v1410 = vpop.xlane.xlu0 %1409
    %v1411 = vsel %vm146, %v1407, 0.0
    %1412 = vadd.xlane.f32.xlu0 %v1411
    %v1413 = vpop.xlane.xlu0 %1412
    %v1414 = vmul.f32 %v1410, %v642
    %v1415 = vmul.f32 %v1413, %v642
    %v1416 = vsub.f32 %v1406, %v1414
    %v1417 = vsub.f32 %v1407, %v1415
    %v1418 = vmul.f32 %v1416, %v1416
    %v1419 = vmul.f32 %v1417, %v1417
    %v1420 = vsel %vm146, %v1418, 0.0
    %1421 = vadd.xlane.f32.xlu0 %v1420
    %v1422 = vpop.xlane.xlu0 %1421
    %v1423 = vsel %vm146, %v1419, 0.0
    %1424 = vadd.xlane.f32.xlu0 %v1423
    %v1425 = vpop.xlane.xlu0 %1424
    %v1426 = vmul.f32 %v1422, %v642
    %v1427 = vmul.f32 %v1425, %v642
    %v1428 = vadd.f32 %v1426, 1e-05
    %v1429 = vadd.f32 %v1427, 1e-05
    %v1430 = vrsqrt.pop %v1428
    %v1431 = vrsqrt.pop %v1429
    %v1432 = vmul.f32 %v1416, %v1430
    %v1433 = vmul.f32 %v1417, %v1431
    %v1434 = vlaneseq
    %v1435 = vshrl.u32 %v1434, 7
    %v1436 = vsub.s32 0, %v1435
    %v1437 = vrot.slane %v900, %v1436
    %v1438 = vmul.f32 %v1432, %v1437
    %v1439 = vmul.f32 %v1433, %v1437
    %v1440 = vlaneseq
    %v1441 = vshrl.u32 %v1440, 7
    %v1442 = vsub.s32 0, %v1441
    %v1443 = vrot.slane %v901, %v1442
    %v1444 = vadd.f32 %v1438, %v1443
    %v1445 = vadd.f32 %v1439, %v1443
    %v1446 = vpack.c.bf16 %v1445, %v1444
    %v1447 = vlaneseq
    %v1448 = vshrl.u32 %v1447, 7
    %v1449 = vsub.s32 0, %v1448
    %v1450 = vrot.slane %v898, %v1449
    %v1459 = vunpack.c.l.b16 %v882
    %v1460 = vunpack.c.l.b16 %v883
    %v1461 = vunpack.c.l.b16 %v884
    %v1462 = vunpack.c.l.b16 %v885
    %v1463 = vunpack.c.l.b16 %v886
    %v1464 = vunpack.c.l.b16 %v887
    %v1465 = vunpack.c.l.b16 %v888
    %v1466 = vunpack.c.l.b16 %v889
    %v1467 = vpack.c.b16 %v1460, %v1459
    %v1468 = vpack.c.b16 %v1462, %v1461
    %v1469 = vpack.c.b16 %v1464, %v1463
    %v1470 = vpack.c.b16 %v1466, %v1465
    %v1472 = vsel %vm146, %v1446, 0
    %v1475 = vsel %vm146, %v1467, 0
    %v1478 = vsel %vm146, %v1468, 0
    %v1481 = vsel %vm146, %v1469, 0
    %v1484 = vsel %vm146, %v1470, 0
    %1486 = vmatprep.subr.bf16.mxu0 0
    %1487 = vmatpush1.bf16.xpose.msra.mxu0 %v1475
    %1488 = vmatprep.subr.bf16.mxu0 0
    %1489 = vmatpush1.bf16.xpose.msra.mxu0 %v1478
    %1490 = vmatprep.subr.bf16.mxu0 0
    %1491 = vmatpush1.bf16.xpose.msra.mxu0 %v1481
    %1492 = vmatprep.subr.bf16.mxu0 0
    %1493 = vmatpush1.bf16.xpose.msra.mxu0 %v1484
    %1494 = vmatprep.subr.bf16.mxu0 0
    %1495 = vmatpush1.bf16.xpose.msra.mxu0 0
    %1496 = vmatprep.subr.bf16.mxu0 0
    %1497 = vmatpush1.bf16.xpose.msra.mxu0 0
    %1498 = vmatprep.subr.bf16.mxu0 0
    %1499 = vmatpush1.bf16.xpose.msra.mxu0 0
    %1500 = vmatprep.subr.bf16.mxu0 0
    %1501 = vmatpush1.bf16.xpose.msra.mxu0 0
    %1502 = vmatprep.subr.bf16.mxu0 0
    %1503 = vmatpush1.bf16.xpose.msra.mxu0 0
    %1504 = vmatprep.subr.bf16.mxu0 0
    %1505 = vmatpush1.bf16.xpose.msra.mxu0 0
    %1506 = vmatprep.subr.bf16.mxu0 0
    %1507 = vmatpush1.bf16.xpose.msra.mxu0 0
    %1508 = vmatprep.subr.bf16.mxu0 0
    %1509 = vmatpush1.bf16.xpose.msra.mxu0 0
    %1510 = vmatprep.subr.bf16.mxu0 0
    %1511 = vmatpush1.bf16.xpose.msra.mxu0 0
    %1512 = vmatprep.subr.bf16.mxu0 0
    %1513 = vmatpush1.bf16.xpose.msra.mxu0 0
    %1514 = vmatprep.subr.bf16.mxu0 0
    %1515 = vmatpush1.bf16.xpose.msra.mxu0 0
    %1516 = vmatprep.subr.bf16.mxu0 0
    %1517 = vmatpush1.bf16.xpose.msra.mxu0 0
    %1518 = vmatprep.mubr.bf16.mxu0 0
    %1519 = vmatmul.mubr.bf16.gmra.mrb[0].mxu0 %v1472
    %v1520 = vpop.f32.mrb[0].mxu0
    %v1521 = vadd.f32 %v1450, %v1520
    %v1522 = vpop.f32.mrb[0].mxu0
    %v1523 = vpop.f32.mrb[0].mxu0
    %v1524 = vadd.f32 %v1450, %v1523
    %v1525 = vpop.f32.mrb[0].mxu0
    %1526 = vdwg.mxu0
    %v1527 = vmax.f32 %v1521, 0.0
    %v1528 = vmax.f32 %v1524, 0.0
    %v1529 = vpack.c.bf16 %v1528, %v1527
    %v1534 = vunpack.c.l.b16 %v890
    %v1535 = vunpack.c.l.b16 %v891
    %v1536 = vunpack.c.l.b16 %v892
    %v1537 = vunpack.c.l.b16 %v893
    %v1538 = vpack.c.b16 %v1535, %v1534
    %v1539 = vpack.c.b16 %v1537, %v1536
    %v1541 = vsel %vm769, %v1529, 0
    %v1544 = vsel %vm769, %v1538, 0
    %v1547 = vsel %vm769, %v1539, 0
    %1549 = vmatprep.subr.bf16.mxu0 0
    %1550 = vmatpush1.bf16.xpose.msra.mxu0 %v1544
    %1551 = vmatprep.subr.bf16.mxu0 0
    %1552 = vmatpush1.bf16.xpose.msra.mxu0 %v1547
    %1553 = vmatprep.subr.bf16.mxu0 0
    %1554 = vmatpush1.bf16.xpose.msra.mxu0 0
    %1555 = vmatprep.subr.bf16.mxu0 0
    %1556 = vmatpush1.bf16.xpose.msra.mxu0 0
    %1557 = vmatprep.subr.bf16.mxu0 0
    %1558 = vmatpush1.bf16.xpose.msra.mxu0 0
    %1559 = vmatprep.subr.bf16.mxu0 0
    %1560 = vmatpush1.bf16.xpose.msra.mxu0 0
    %1561 = vmatprep.subr.bf16.mxu0 0
    %1562 = vmatpush1.bf16.xpose.msra.mxu0 0
    %1563 = vmatprep.subr.bf16.mxu0 0
    %1564 = vmatpush1.bf16.xpose.msra.mxu0 0
    %1565 = vmatprep.subr.bf16.mxu0 0
    %1566 = vmatpush1.bf16.xpose.msra.mxu0 0
    %1567 = vmatprep.subr.bf16.mxu0 0
    %1568 = vmatpush1.bf16.xpose.msra.mxu0 0
    %1569 = vmatprep.subr.bf16.mxu0 0
    %1570 = vmatpush1.bf16.xpose.msra.mxu0 0
    %1571 = vmatprep.subr.bf16.mxu0 0
    %1572 = vmatpush1.bf16.xpose.msra.mxu0 0
    %1573 = vmatprep.subr.bf16.mxu0 0
    %1574 = vmatpush1.bf16.xpose.msra.mxu0 0
    %1575 = vmatprep.subr.bf16.mxu0 0
    %1576 = vmatpush1.bf16.xpose.msra.mxu0 0
    %1577 = vmatprep.subr.bf16.mxu0 0
    %1578 = vmatpush1.bf16.xpose.msra.mxu0 0
    %1579 = vmatprep.subr.bf16.mxu0 0
    %1580 = vmatpush1.bf16.xpose.msra.mxu0 0
    %1581 = vmatprep.mubr.bf16.mxu0 0
    %1582 = vmatmul.mubr.bf16.gmra.mrb[0].mxu0 %v1541
    %v1583 = vpop.f32.mrb[0].mxu0
    %v1584 = vadd.f32 0.0, %v1583
    %v1585 = vpop.f32.mrb[0].mxu0
    %v1586 = vpop.f32.mrb[0].mxu0
    %v1587 = vadd.f32 0.0, %v1586
    %v1588 = vpop.f32.mrb[0].mxu0
    %1589 = vdwg.mxu0
    %v1590 = vadd.f32 %v1444, %v1584
    %v1591 = vadd.f32 %v1445, %v1587
    %v1592 = vlaneseq
    %v1593 = vshrl.u32 %v1592, 7
    %v1594 = vsub.s32 0, %v1593
    %v1595 = vrot.slane %v899, %v1594
    %v1596 = vadd.f32 %v1590, %v1595
    %v1597 = vadd.f32 %v1591, %v1595
    %v1598 = vsel %vm146, %v1596, 0.0
    %1599 = vadd.xlane.f32.xlu0 %v1598
    %v1600 = vpop.xlane.xlu0 %1599
    %v1601 = vsel %vm146, %v1597, 0.0
    %1602 = vadd.xlane.f32.xlu0 %v1601
    %v1603 = vpop.xlane.xlu0 %1602
    %v1604 = vmul.f32 %v1600, %v642
    %v1605 = vmul.f32 %v1603, %v642
    %v1606 = vsub.f32 %v1596, %v1604
    %v1607 = vsub.f32 %v1597, %v1605
    %v1608 = vmul.f32 %v1606, %v1606
    %v1609 = vmul.f32 %v1607, %v1607
    %v1610 = vsel %vm146, %v1608, 0.0
    %1611 = vadd.xlane.f32.xlu0 %v1610
    %v1612 = vpop.xlane.xlu0 %1611
    %v1613 = vsel %vm146, %v1609, 0.0
    %1614 = vadd.xlane.f32.xlu0 %v1613
    %v1615 = vpop.xlane.xlu0 %1614
    %v1616 = vmul.f32 %v1612, %v642
    %v1617 = vmul.f32 %v1615, %v642
    %v1618 = vadd.f32 %v1616, 1e-05
    %v1619 = vadd.f32 %v1617, 1e-05
    %v1620 = vrsqrt.pop %v1618
    %v1621 = vrsqrt.pop %v1619
    %v1622 = vmul.f32 %v1606, %v1620
    %v1623 = vmul.f32 %v1607, %v1621
    %v1624 = vlaneseq
    %v1625 = vshrl.u32 %v1624, 7
    %v1626 = vsub.s32 0, %v1625
    %v1627 = vrot.slane %v902, %v1626
    %v1628 = vmul.f32 %v1622, %v1627
    %v1629 = vmul.f32 %v1623, %v1627
    %v1630 = vlaneseq
    %v1631 = vshrl.u32 %v1630, 7
    %v1632 = vsub.s32 0, %v1631
    %v1633 = vrot.slane %v903, %v1632
    %v1634 = vadd.f32 %v1628, %v1633
    %v1635 = vadd.f32 %v1629, %v1633
    %v1636 = vld [vmem:[#allocation5 + $0xe0] sm:$0xf]
    %v1637 = vld [vmem:[#allocation5 + $0xe4] sm:$0xf]
    %v1638 = vld [vmem:[#allocation7 + $0x14] sm:$0x1]
    %v1639 = vpack.c.bf16 %v1635, %v1634
    %v1640 = vlaneseq
    %v1641 = vshrl.u32 %v1640, 7
    %v1642 = vsub.s32 0, %v1641
    %v1643 = vrot.slane %v1638, %v1642
    %v1646 = vunpack.c.l.b16 %v1636
    %v1647 = vunpack.c.l.b16 %v1637
    %v1648 = vpack.c.b16 %v1647, %v1646
    %v1650 = vsel %vm146, %v1639, 0
    %v1653 = vsel %vm146, %v1648, 0
    %1655 = vmatprep.subr.bf16.mxu0 0
    %1656 = vmatpush1.bf16.xpose.msra.mxu0 %v1653
    %1657 = vmatprep.subr.bf16.mxu0 0
    %1658 = vmatpush1.bf16.xpose.msra.mxu0 0
    %1659 = vmatprep.subr.bf16.mxu0 0
    %1660 = vmatpush1.bf16.xpose.msra.mxu0 0
    %1661 = vmatprep.subr.bf16.mxu0 0
    %1662 = vmatpush1.bf16.xpose.msra.mxu0 0
    %1663 = vmatprep.subr.bf16.mxu0 0
    %1664 = vmatpush1.bf16.xpose.msra.mxu0 0
    %1665 = vmatprep.subr.bf16.mxu0 0
    %1666 = vmatpush1.bf16.xpose.msra.mxu0 0
    %1667 = vmatprep.subr.bf16.mxu0 0
    %1668 = vmatpush1.bf16.xpose.msra.mxu0 0
    %1669 = vmatprep.subr.bf16.mxu0 0
    %1670 = vmatpush1.bf16.xpose.msra.mxu0 0
    %1671 = vmatprep.subr.bf16.mxu0 0
    %1672 = vmatpush1.bf16.xpose.msra.mxu0 0
    %1673 = vmatprep.subr.bf16.mxu0 0
    %1674 = vmatpush1.bf16.xpose.msra.mxu0 0
    %1675 = vmatprep.subr.bf16.mxu0 0
    %1676 = vmatpush1.bf16.xpose.msra.mxu0 0
    %1677 = vmatprep.subr.bf16.mxu0 0
    %1678 = vmatpush1.bf16.xpose.msra.mxu0 0
    %1679 = vmatprep.subr.bf16.mxu0 0
    %1680 = vmatpush1.bf16.xpose.msra.mxu0 0
    %1681 = vmatprep.subr.bf16.mxu0 0
    %1682 = vmatpush1.bf16.xpose.msra.mxu0 0
    %1683 = vmatprep.subr.bf16.mxu0 0
    %1684 = vmatpush1.bf16.xpose.msra.mxu0 0
    %1685 = vmatprep.subr.bf16.mxu0 0
    %1686 = vmatpush1.bf16.xpose.msra.mxu0 0
    %1687 = vmatprep.mubr.bf16.mxu0 0
    %1688 = vmatmul.mubr.bf16.gmra.mrb[0].mxu0 %v1650
    %v1689 = vpop.f32.mrb[0].mxu0
    %v1690 = vadd.f32 %v1643, %v1689
    %v1691 = vpop.f32.mrb[0].mxu0
    %v1692 = vpop.f32.mrb[0].mxu0
    %v1693 = vadd.f32 %v1643, %v1692
    %v1694 = vpop.f32.mrb[0].mxu0
    %1695 = vdwg.mxu0
    %vm1696 = vcmask 130048
    %1697 = vst.msk [vmem:[#allocation8] sm:$0xff] %vm1696, %v1690
    %1698 = vst.msk [vmem:[#allocation8 + $0x8] sm:$0xff] %vm1696, %v1693
    // Predicated region
    $region26: #{tpu_custom_call.1} parent=1 // pred_check
      _
    $region27: #{tpu_custom_call.1} parent=1 // pred_check_branch
      %1700 = sbr.rel (0) target = $region29
    $region28: #{tpu_custom_call.1} parent=1 // pred_region
      %s1702 = ssub.s32 256, 256
      %1703 = vsyncadd [#allocation4], %s1702
      %s1704 = sshll.u32 [#allocation8], 4
      %s1705 = int_to_ptr.vmem [resolvable:$true] %s1704
      %1710 = dma.vmem_to_hbm [thread:$0]  %s1705, 256, %s3, [#allocation4], 128, 128, 8
    $region29: #{tpu_custom_call.1} parent=1 // pred_fallthru
      _
    // Predicated region
    $region30: #{tpu_custom_call.1} parent=1 // pred_check
      _
    $region31: #{tpu_custom_call.1} parent=1 // pred_check_branch
      %1712 = sbr.rel (0) target = $region33
    $region32: #{tpu_custom_call.1} parent=1 // pred_region
      %1713 = dma.done [#allocation4], 256
    $region33: #{tpu_custom_call.1} parent=1 // pred_fallthru
      _
    %1714 = vsyncpa [#allocation3], 1
    %1715 = vsyncpa [#allocation6], 1
    %1716 = vsyncpa [#allocation4], 1

</llo_original>
